<compile_context>
chip_gen: v6e
topology: v6e:2x2x1
jax: 0.10.0
libtpu: 0.0.40
codegen_flags: <defaults>
</compile_context>

<pallas_src>
import functools

import numpy as np
import jax
import jax.numpy as jnp
from jax.experimental import pallas as pl
from jax.experimental.pallas import tpu as pltpu

CLIP_LEN = 100            # torch.split(preds, 100, dim=1)
NFFT = 512
NFREQ = NFFT // 2 + 1     # 257 rfft bins
KP = 384                  # 3 clips * 100 samples, zero-padded to 3 lane tiles
FP = 384                  # lane-padded width of each DFT half (3*128 >= 257)
CW = 2 * FP               # fused [cos | -sin] width per clip
MAX_TB = 512              # row-block cap, sized by VMEM (not MXU width)


@functools.lru_cache(maxsize=None)
def _fused_basis():
    """(KP, 3*CW) f32 block-diagonal DFT basis with mean-centering folded in.

    Rows [100c, 100c+100) x cols [c*CW, c*CW+CW) hold clip c's centered
    cos / -sin bases (each half lane-padded to FP columns); everything else
    is zero, so  x_padded @ basis  yields, per clip,
        re = cols [c*CW,      c*CW+FP)   (bins 0..256, rest 0)
        im = cols [c*CW+FP,  (c+1)*CW)
    of rfft(clip_c - mean(clip_c), n=512).  Built once and cached on device.
    """
    t = np.arange(CLIP_LEN, dtype=np.float64)[:, None]
    k = np.arange(NFREQ, dtype=np.float64)[None, :]
    ang = 2.0 * np.pi * t * k / NFFT
    cos = np.cos(ang)
    msin = -np.sin(ang)
    # fold "x - mean(x)" into the basis: sum_t x_t*(c_t - mean_s c_s)
    #                                  == sum_t (x_t - xbar)*c_t   (exact)
    cos -= cos.mean(axis=0, keepdims=True)
    msin -= msin.mean(axis=0, keepdims=True)
    m = np.zeros((KP, 3 * CW), dtype=np.float64)
    for c in range(3):
        r0, c0 = c * CLIP_LEN, c * CW
        m[r0:r0 + CLIP_LEN, c0:c0 + NFREQ] = cos
        m[r0:r0 + CLIP_LEN, c0 + FP:c0 + FP + NFREQ] = msin
    return jnp.asarray(m.astype(np.float32))


def _loss_kernel(x_ref, basis_ref, out_ref, *, inv_scale):
    # x_ref:     (TB, KP)   f32 VMEM  cols 0..299 = the three clips, rest zero
    # basis_ref: (KP, 3*CW) f32 VMEM  block-diagonal centered DFT basis
    # out_ref:   (8, 128)   f32 VMEM  this grid step's partial loss (broadcast)

    # clip extraction + mean-centering + rfft(n=512) in ONE MXU pass
    ri = jnp.dot(x_ref[...], basis_ref[...],
                 preferred_element_type=jnp.float32)          # (TB, 3*CW)

    def normalized_psd(c):
        re = ri[:, c * CW:c * CW + FP]                        # lane-tile-aligned views
        im = ri[:, c * CW + FP:(c + 1) * CW]
        p = re * re + im * im                                 # (TB, FP); padded lanes 0
        denom = jnp.sum(p, axis=1, keepdims=True)
        # guard all-zero (padded) rows so 0/0 cannot poison the reduction.
        # NOTE: a real clip that is exactly constant would give NaN in PyTorch;
        # here it contributes 0 instead.
        denom = jnp.where(denom > 0.0, denom, 1.0)
        return p * pl.reciprocal(denom, approx=True)

    p1 = normalized_psd(0)
    p2 = normalized_psd(1)
    p3 = normalized_psd(2)
    d12 = p1 - p2
    d23 = p2 - p3

    # MSE(p1,p2) + MSE(p2,p3): padded rows/lanes are exactly zero, so plain
    # sums scaled by the compile-time 1/(B*257) give the true means.  The
    # partial is broadcast over the (8,128) output tile pre-divided by 1024,
    # so the wrapper-side jnp.sum over all partial tiles recovers it.
    partial = (jnp.sum(d12 * d12) + jnp.sum(d23 * d23)) * inv_scale
    out_ref[...] = jnp.full((8, 128), partial * (1.0 / 1024.0), dtype=jnp.float32)


@jax.jit
def _loss_jit(preds, basis):
    preds = preds.astype(jnp.float32)
    B, T = preds.shape
    assert T >= 3 * CLIP_LEN, "need at least 3 clips of length 100"

    # NOTE: the first torch_power_spectral_density(preds, ...) in forward()
    # is dead code (its result is unused), so it is not computed.

    # only wrapper-side prep: keep the first 300 samples, zero-pad batch rows
    # to a TB multiple and lanes 300..383.
    tb = min(MAX_TB, ((B + 7) // 8) * 8)
    g = pl.cdiv(B, tb)
    bp = g * tb
    x = jnp.pad(preds[:, :3 * CLIP_LEN], ((0, bp - B), (0, KP - 3 * CLIP_LEN)))

    inv_scale = 1.0 / float(B * NFREQ)

    partials = pl.pallas_call(
        functools.partial(_loss_kernel, inv_scale=inv_scale),
        out_shape=jax.ShapeDtypeStruct((g * 8, 128), jnp.float32),
        grid=(g,),
        in_specs=[
            pl.BlockSpec((tb, KP), lambda i: (i, 0)),
            # grid-invariant fused DFT basis.
            # TODO(synk): pipeline_mode=pl.Buffered(1) would drop its second
            # VMEM buffer; left at the default for maximum lowering robustness.
            pl.BlockSpec((KP, 3 * CW), lambda i: (0, 0)),
        ],
        # each grid step owns its own output block -> safe to shard the grid
        # across v7x's two TensorCores.
        out_specs=pl.BlockSpec((8, 128), lambda i: (i, 0)),
        compiler_params=pltpu.CompilerParams(
            dimension_semantics=("parallel",),
            vmem_limit_bytes=48 * 1024 * 1024),   # v5e default scoped VMEM is 16 MiB
    )(x, basis)
    return jnp.sum(partials)


def unsupervised_loss(preds):
    """preds: (B, T) with T >= 300. Returns the scalar loss of the nn.Module."""
    return _loss_jit(preds, _fused_basis())


def _reference_loss(preds):
    """Pure-JAX reference mirroring the PyTorch module, for a sanity check."""
    preds = preds.astype(jnp.float32)

    def psd_norm(x):
        centered = x - jnp.mean(x, axis=1, keepdims=True)
        r = jnp.fft.rfft(centered, n=NFFT, axis=1)
        p = jnp.abs(r) ** 2
        return p / jnp.sum(p, axis=1, keepdims=True)

    p1 = psd_norm(preds[:, 0:100])
    p2 = psd_norm(preds[:, 100:200])
    p3 = psd_norm(preds[:, 200:300])
    return jnp.mean((p1 - p2) ** 2) + jnp.mean((p2 - p3) ** 2)


if __name__ == "__main__":
    key = jax.random.PRNGKey(0)
    B, T = 2, 3 * CLIP_LEN                 # preds: (2, 300)
    preds = jax.random.normal(key, (B, T), dtype=jnp.float32)

    loss = unsupervised_loss(preds)
    jax.block_until_ready(loss)

    ref = _reference_loss(preds)
    jax.block_until_ready(ref)

    assert np.allclose(np.asarray(loss), np.asarray(ref), rtol=2e-2, atol=1e-6), (
        float(loss), float(ref))
    print("KERNEL_OK")
</pallas_src>

<mosaic_0001>
module attributes {stable_mosaic.version = 11 : i64} {
  func.func @_loss_kernel(%arg0: i32, %arg1: memref<8x384xf32, #tpu.memory_space<vmem>>, %arg2: memref<384x2304xf32, #tpu.memory_space<vmem>>, %arg3: memref<8x128xf32, #tpu.memory_space<vmem>>) attributes {dimension_semantics = [#tpu.dimension_semantics<parallel>], iteration_bounds = array<i64: 1>, scalar_prefetch = 0 : i64, scratch_operands = 0 : i64, tpu.core_type = #tpu.core_type<tc>, window_params = [{transform_indices = @transform_0, window_bounds = array<i64: 8, 384>}, {pipeline_mode = #tpu.pipeline_mode<synchronous>, transform_indices = @transform_1, window_bounds = array<i64: 384, 2304>}, {transform_indices = @transform_2, window_bounds = array<i64: 8, 128>}]} {
    %c0 = arith.constant 0 : index
    %c0_0 = arith.constant 0 : index
    %0 = vector.load %arg1[%c0, %c0_0] : memref<8x384xf32, #tpu.memory_space<vmem>>, vector<8x384xf32>
    %c0_1 = arith.constant 0 : index
    %c0_2 = arith.constant 0 : index
    %1 = vector.load %arg2[%c0_1, %c0_2] : memref<384x2304xf32, #tpu.memory_space<vmem>>, vector<384x2304xf32>
    %cst = arith.constant dense<0.000000e+00> : vector<8x2304xf32>
    %2 = tpu.matmul %0, %1, %cst {dimension_numbers = #tpu.dot_dimension_numbers<[1], [0], [0], [1], [0, 0, 1, 1], [], []>} : vector<8x384xf32>, vector<384x2304xf32>, vector<8x2304xf32> -> vector<8x2304xf32>
    %3 = vector.extract_strided_slice %2 {offsets = [0, 0], sizes = [8, 384], strides = [1, 1]} : vector<8x2304xf32> to vector<8x384xf32>
    %4 = vector.extract_strided_slice %2 {offsets = [0, 384], sizes = [8, 384], strides = [1, 1]} : vector<8x2304xf32> to vector<8x384xf32>
    %5 = arith.mulf %3, %3 : vector<8x384xf32>
    %6 = arith.mulf %4, %4 : vector<8x384xf32>
    %7 = arith.addf %5, %6 : vector<8x384xf32>
    %cst_3 = arith.constant dense<0.000000e+00> : vector<8xf32>
    %8 = vector.multi_reduction <add>, %7, %cst_3 [1] : vector<8x384xf32> to vector<8xf32>
    %9 = vector.shape_cast %8 : vector<8xf32> to vector<8x1xf32>
    %cst_4 = arith.constant 0.000000e+00 : f32
    %10 = vector.broadcast %cst_4 : f32 to vector<8x1xf32>
    %11 = arith.cmpf ogt, %9, %10 : vector<8x1xf32>
    %cst_5 = arith.constant 1.000000e+00 : f32
    %12 = vector.broadcast %cst_5 : f32 to vector<8x1xf32>
    %13 = arith.select %11, %9, %12 : vector<8x1xi1>, vector<8x1xf32>
    %14 = tpu.reciprocal %13 {approx = true} : vector<8x1xf32> -> vector<8x1xf32>
    %15 = vector.broadcast %14 : vector<8x1xf32> to vector<8x384xf32>
    %16 = arith.mulf %7, %15 : vector<8x384xf32>
    %17 = vector.extract_strided_slice %2 {offsets = [0, 768], sizes = [8, 384], strides = [1, 1]} : vector<8x2304xf32> to vector<8x384xf32>
    %18 = vector.extract_strided_slice %2 {offsets = [0, 1152], sizes = [8, 384], strides = [1, 1]} : vector<8x2304xf32> to vector<8x384xf32>
    %19 = arith.mulf %17, %17 : vector<8x384xf32>
    %20 = arith.mulf %18, %18 : vector<8x384xf32>
    %21 = arith.addf %19, %20 : vector<8x384xf32>
    %cst_6 = arith.constant dense<0.000000e+00> : vector<8xf32>
    %22 = vector.multi_reduction <add>, %21, %cst_6 [1] : vector<8x384xf32> to vector<8xf32>
    %23 = vector.shape_cast %22 : vector<8xf32> to vector<8x1xf32>
    %cst_7 = arith.constant 0.000000e+00 : f32
    %24 = vector.broadcast %cst_7 : f32 to vector<8x1xf32>
    %25 = arith.cmpf ogt, %23, %24 : vector<8x1xf32>
    %cst_8 = arith.constant 1.000000e+00 : f32
    %26 = vector.broadcast %cst_8 : f32 to vector<8x1xf32>
    %27 = arith.select %25, %23, %26 : vector<8x1xi1>, vector<8x1xf32>
    %28 = tpu.reciprocal %27 {approx = true} : vector<8x1xf32> -> vector<8x1xf32>
    %29 = vector.broadcast %28 : vector<8x1xf32> to vector<8x384xf32>
    %30 = arith.mulf %21, %29 : vector<8x384xf32>
    %31 = vector.extract_strided_slice %2 {offsets = [0, 1536], sizes = [8, 384], strides = [1, 1]} : vector<8x2304xf32> to vector<8x384xf32>
    %32 = vector.extract_strided_slice %2 {offsets = [0, 1920], sizes = [8, 384], strides = [1, 1]} : vector<8x2304xf32> to vector<8x384xf32>
    %33 = arith.mulf %31, %31 : vector<8x384xf32>
    %34 = arith.mulf %32, %32 : vector<8x384xf32>
    %35 = arith.addf %33, %34 : vector<8x384xf32>
    %cst_9 = arith.constant dense<0.000000e+00> : vector<8xf32>
    %36 = vector.multi_reduction <add>, %35, %cst_9 [1] : vector<8x384xf32> to vector<8xf32>
    %37 = vector.shape_cast %36 : vector<8xf32> to vector<8x1xf32>
    %cst_10 = arith.constant 0.000000e+00 : f32
    %38 = vector.broadcast %cst_10 : f32 to vector<8x1xf32>
    %39 = arith.cmpf ogt, %37, %38 : vector<8x1xf32>
    %cst_11 = arith.constant 1.000000e+00 : f32
    %40 = vector.broadcast %cst_11 : f32 to vector<8x1xf32>
    %41 = arith.select %39, %37, %40 : vector<8x1xi1>, vector<8x1xf32>
    %42 = tpu.reciprocal %41 {approx = true} : vector<8x1xf32> -> vector<8x1xf32>
    %43 = vector.broadcast %42 : vector<8x1xf32> to vector<8x384xf32>
    %44 = arith.mulf %35, %43 : vector<8x384xf32>
    %45 = arith.subf %16, %30 : vector<8x384xf32>
    %46 = arith.subf %30, %44 : vector<8x384xf32>
    %47 = arith.mulf %45, %45 : vector<8x384xf32>
    %48 = vector.shape_cast %47 : vector<8x384xf32> to vector<1x8x384xf32>
    %cst_12 = arith.constant dense<0.000000e+00> : vector<1xf32>
    %49 = vector.multi_reduction <add>, %48, %cst_12 [1, 2] : vector<1x8x384xf32> to vector<1xf32>
    %50 = vector.shape_cast %49 : vector<1xf32> to vector<1x1x1xf32>
    %51 = vector.extract %50[0, 0, 0] : f32 from vector<1x1x1xf32>
    %52 = arith.mulf %46, %46 : vector<8x384xf32>
    %53 = vector.shape_cast %52 : vector<8x384xf32> to vector<1x8x384xf32>
    %cst_13 = arith.constant dense<0.000000e+00> : vector<1xf32>
    %54 = vector.multi_reduction <add>, %53, %cst_13 [1, 2] : vector<1x8x384xf32> to vector<1xf32>
    %55 = vector.shape_cast %54 : vector<1xf32> to vector<1x1x1xf32>
    %56 = vector.extract %55[0, 0, 0] : f32 from vector<1x1x1xf32>
    %57 = arith.addf %51, %56 : f32
    %cst_14 = arith.constant 0.00194552529 : f32
    %58 = arith.mulf %57, %cst_14 : f32
    %cst_15 = arith.constant 9.765625E-4 : f32
    %59 = arith.mulf %58, %cst_15 : f32
    %60 = vector.broadcast %59 : f32 to vector<8x128xf32>
    %c0_16 = arith.constant 0 : index
    %c0_17 = arith.constant 0 : index
    %61 = vector.load %arg3[%c0_16, %c0_17] : memref<8x128xf32, #tpu.memory_space<vmem>>, vector<8x128xf32>
    tpu.vector_store %arg3[%c0_16, %c0_17], %60 {strides = array<i32>} : memref<8x128xf32, #tpu.memory_space<vmem>>, vector<8x128xf32>,
    return
  }
  func.func @transform_0(%arg0: i32) -> (i32, i32) {
    %c0_i32 = arith.constant 0 : i32
    %c0_i32_0 = arith.constant 0 : i32
    return %arg0, %c0_i32 : i32, i32
  }
  func.func @transform_1(%arg0: i32) -> (i32, i32) {
    %c0_i32 = arith.constant 0 : i32
    %c0_i32_0 = arith.constant 0 : i32
    %c0_i32_1 = arith.constant 0 : i32
    return %c0_i32, %c0_i32_0 : i32, i32
  }
  func.func @transform_2(%arg0: i32) -> (i32, i32) {
    %c0_i32 = arith.constant 0 : i32
    %c0_i32_0 = arith.constant 0 : i32
    return %arg0, %c0_i32 : i32, i32
  }
}

</mosaic_0001>

<llo_original>
// kernel: _loss_jit.1
$region0: #{_loss_jit.1}
  #allocation0 [shape = 'u32[]', space=smem, size = 0x4, offset = 0x4, fixed_abs, tag = 'smem constant byte address 0x4 - core index']
  #allocation1 [shape = 'u32[144,128]{1,0:T(1,128)}', space=vmem, size = 0x12000, scoped, tag = 'internal scratch']
  %s0 = inlined_call_operand.vmem [shape: f32[8,384], index: 0, kind: input, shape index: {}]
  %s1 = inlined_call_operand.hbm [shape: f32[384,2304], index: 1, kind: input, shape index: {}]
  %s2 = inlined_call_operand.vmem [shape: f32[8,128], index: 2, kind: output, shape index: {}]
  %s3 = sld [smem:[#allocation0]]
  $region22: #{_loss_jit.1} parent=0
    _
  %s5 = ssub.s32 1, %s3
  %s6 = scalar_select 0, %s5, %s3
  $region1: #{_loss_jit.1} parent=0
    #allocation2 [shape = 'u8[3538944]{0}', space=vmem, size = 0x360000, scoped, tag = 'input window, operand 1, single buffered']
    #allocation3 [shape = 's32[1]{0}', space=sflag, size = 0x4, scoped, tag = 'scoped memory for _loss_jit.1']
    %7 = vsyncpa [#allocation3], 0
    // Predicated region
    $region2: #{_loss_jit.1} parent=1 // pred_check
      _
    $region3: #{_loss_jit.1} parent=1 // pred_check_branch
      %9 = sbr.rel (0) target = $region5
    $region4: #{_loss_jit.1} parent=1 // pred_region
      _
    $region5: #{_loss_jit.1} parent=1 // pred_fallthru
      _
    // Predicated region
    $region6: #{_loss_jit.1} parent=1 // pred_check
      _
    $region7: #{_loss_jit.1} parent=1 // pred_check_branch
      %11 = sbr.rel (0) target = $region9
    $region8: #{_loss_jit.1} parent=1 // pred_region
      %s13 = ssub.s32 110592, 110592
      %14 = vsyncadd [#allocation3], %s13
      %s15 = sshll.u32 [#allocation2], 4
      %s16 = int_to_ptr.vmem [resolvable:$true] %s15
      %21 = dma.hbm_to_vmem [thread:$0]  %s1, 110592, %s16, [#allocation3], 2304, 2304, 144
    $region9: #{_loss_jit.1} parent=1 // pred_fallthru
      _
    // Predicated region
    $region10: #{_loss_jit.1} parent=1 // pred_check
      _
    $region11: #{_loss_jit.1} parent=1 // pred_check_branch
      %23 = sbr.rel (0) target = $region13
    $region12: #{_loss_jit.1} parent=1 // pred_region
      %24 = dma.done [#allocation3], 110592
    $region13: #{_loss_jit.1} parent=1 // pred_fallthru
      _
    %v25 = vld [vmem:[%s0] sm:$0xff]
    %v26 = vld [vmem:[%s0 + $0x8] sm:$0xff]
    %v27 = vld [vmem:[%s0 + $0x10] sm:$0xff]
    %v28 = vld [vmem:[#allocation2] sm:$0xff]
    %v29 = vld [vmem:[#allocation2 + $0x8] sm:$0xff]
    %v30 = vld [vmem:[#allocation2 + $0x10] sm:$0xff]
    %v31 = vld [vmem:[#allocation2 + $0x18] sm:$0xff]
    %v32 = vld [vmem:[#allocation2 + $0x20] sm:$0xff]
    %v33 = vld [vmem:[#allocation2 + $0x28] sm:$0xff]
    %v34 = vld [vmem:[#allocation2 + $0x30] sm:$0xff]
    %v35 = vld [vmem:[#allocation2 + $0x38] sm:$0xff]
    %v36 = vld [vmem:[#allocation2 + $0x40] sm:$0xff]
    %v37 = vld [vmem:[#allocation2 + $0x48] sm:$0xff]
    %v38 = vld [vmem:[#allocation2 + $0x50] sm:$0xff]
    %v39 = vld [vmem:[#allocation2 + $0x58] sm:$0xff]
    %v40 = vld [vmem:[#allocation2 + $0x60] sm:$0xff]
    %v41 = vld [vmem:[#allocation2 + $0x68] sm:$0xff]
    %v42 = vld [vmem:[#allocation2 + $0x70] sm:$0xff]
    %v43 = vld [vmem:[#allocation2 + $0x78] sm:$0xff]
    %v44 = vld [vmem:[#allocation2 + $0x80] sm:$0xff]
    %v45 = vld [vmem:[#allocation2 + $0x88] sm:$0xff]
    %v46 = vld [vmem:[#allocation2 + $0x90] sm:$0xff]
    %v47 = vld [vmem:[#allocation2 + $0x98] sm:$0xff]
    %v48 = vld [vmem:[#allocation2 + $0xa0] sm:$0xff]
    %v49 = vld [vmem:[#allocation2 + $0xa8] sm:$0xff]
    %v50 = vld [vmem:[#allocation2 + $0xb0] sm:$0xff]
    %v51 = vld [vmem:[#allocation2 + $0xb8] sm:$0xff]
    %v52 = vld [vmem:[#allocation2 + $0xc0] sm:$0xff]
    %v53 = vld [vmem:[#allocation2 + $0xc8] sm:$0xff]
    %v54 = vld [vmem:[#allocation2 + $0xd0] sm:$0xff]
    %v55 = vld [vmem:[#allocation2 + $0xd8] sm:$0xff]
    %v56 = vld [vmem:[#allocation2 + $0xe0] sm:$0xff]
    %v57 = vld [vmem:[#allocation2 + $0xe8] sm:$0xff]
    %v58 = vld [vmem:[#allocation2 + $0xf0] sm:$0xff]
    %v59 = vld [vmem:[#allocation2 + $0xf8] sm:$0xff]
    %v60 = vld [vmem:[#allocation2 + $0x100] sm:$0xff]
    %v61 = vld [vmem:[#allocation2 + $0x108] sm:$0xff]
    %v62 = vld [vmem:[#allocation2 + $0x110] sm:$0xff]
    %v63 = vld [vmem:[#allocation2 + $0x118] sm:$0xff]
    %v64 = vld [vmem:[#allocation2 + $0x120] sm:$0xff]
    %v65 = vld [vmem:[#allocation2 + $0x128] sm:$0xff]
    %v66 = vld [vmem:[#allocation2 + $0x130] sm:$0xff]
    %v67 = vld [vmem:[#allocation2 + $0x138] sm:$0xff]
    %v68 = vld [vmem:[#allocation2 + $0x140] sm:$0xff]
    %v69 = vld [vmem:[#allocation2 + $0x148] sm:$0xff]
    %v70 = vld [vmem:[#allocation2 + $0x150] sm:$0xff]
    %v71 = vld [vmem:[#allocation2 + $0x158] sm:$0xff]
    %v72 = vld [vmem:[#allocation2 + $0x160] sm:$0xff]
    %v73 = vld [vmem:[#allocation2 + $0x168] sm:$0xff]
    %v74 = vld [vmem:[#allocation2 + $0x170] sm:$0xff]
    %v75 = vld [vmem:[#allocation2 + $0x178] sm:$0xff]
    %v76 = vld [vmem:[#allocation2 + $0x180] sm:$0xff]
    %v77 = vld [vmem:[#allocation2 + $0x188] sm:$0xff]
    %v78 = vld [vmem:[#allocation2 + $0x190] sm:$0xff]
    %v79 = vld [vmem:[#allocation2 + $0x198] sm:$0xff]
    %v80 = vld [vmem:[#allocation2 + $0x1a0] sm:$0xff]
    %v81 = vld [vmem:[#allocation2 + $0x1a8] sm:$0xff]
    %v82 = vld [vmem:[#allocation2 + $0x1b0] sm:$0xff]
    %v83 = vld [vmem:[#allocation2 + $0x1b8] sm:$0xff]
    %v84 = vld [vmem:[#allocation2 + $0x1c0] sm:$0xff]
    %v85 = vld [vmem:[#allocation2 + $0x1c8] sm:$0xff]
    %v86 = vld [vmem:[#allocation2 + $0x1d0] sm:$0xff]
    %v87 = vld [vmem:[#allocation2 + $0x1d8] sm:$0xff]
    %v88 = vld [vmem:[#allocation2 + $0x1e0] sm:$0xff]
    %v89 = vld [vmem:[#allocation2 + $0x1e8] sm:$0xff]
    %v90 = vld [vmem:[#allocation2 + $0x1f0] sm:$0xff]
    %v91 = vld [vmem:[#allocation2 + $0x1f8] sm:$0xff]
    %v92 = vld [vmem:[#allocation2 + $0x200] sm:$0xff]
    %v93 = vld [vmem:[#allocation2 + $0x208] sm:$0xff]
    %v94 = vld [vmem:[#allocation2 + $0x210] sm:$0xff]
    %v95 = vld [vmem:[#allocation2 + $0x218] sm:$0xff]
    %v96 = vld [vmem:[#allocation2 + $0x220] sm:$0xff]
    %v97 = vld [vmem:[#allocation2 + $0x228] sm:$0xff]
    %v98 = vld [vmem:[#allocation2 + $0x230] sm:$0xff]
    %v99 = vld [vmem:[#allocation2 + $0x238] sm:$0xff]
    %v100 = vld [vmem:[#allocation2 + $0x240] sm:$0xff]
    %v101 = vld [vmem:[#allocation2 + $0x248] sm:$0xff]
    %v102 = vld [vmem:[#allocation2 + $0x250] sm:$0xff]
    %v103 = vld [vmem:[#allocation2 + $0x258] sm:$0xff]
    %v104 = vld [vmem:[#allocation2 + $0x260] sm:$0xff]
    %v105 = vld [vmem:[#allocation2 + $0x268] sm:$0xff]
    %v106 = vld [vmem:[#allocation2 + $0x270] sm:$0xff]
    %v107 = vld [vmem:[#allocation2 + $0x278] sm:$0xff]
    %v108 = vld [vmem:[#allocation2 + $0x280] sm:$0xff]
    %v109 = vld [vmem:[#allocation2 + $0x288] sm:$0xff]
    %v110 = vld [vmem:[#allocation2 + $0x290] sm:$0xff]
    %v111 = vld [vmem:[#allocation2 + $0x298] sm:$0xff]
    %v112 = vld [vmem:[#allocation2 + $0x2a0] sm:$0xff]
    %v113 = vld [vmem:[#allocation2 + $0x2a8] sm:$0xff]
    %v114 = vld [vmem:[#allocation2 + $0x2b0] sm:$0xff]
    %v115 = vld [vmem:[#allocation2 + $0x2b8] sm:$0xff]
    %v116 = vld [vmem:[#allocation2 + $0x2c0] sm:$0xff]
    %v117 = vld [vmem:[#allocation2 + $0x2c8] sm:$0xff]
    %v118 = vld [vmem:[#allocation2 + $0x2d0] sm:$0xff]
    %v119 = vld [vmem:[#allocation2 + $0x2d8] sm:$0xff]
    %v120 = vld [vmem:[#allocation2 + $0x2e0] sm:$0xff]
    %v121 = vld [vmem:[#allocation2 + $0x2e8] sm:$0xff]
    %v122 = vld [vmem:[#allocation2 + $0x2f0] sm:$0xff]
    %v123 = vld [vmem:[#allocation2 + $0x2f8] sm:$0xff]
    %v124 = vld [vmem:[#allocation2 + $0x300] sm:$0xff]
    %v125 = vld [vmem:[#allocation2 + $0x308] sm:$0xff]
    %v126 = vld [vmem:[#allocation2 + $0x310] sm:$0xff]
    %v127 = vld [vmem:[#allocation2 + $0x318] sm:$0xff]
    %v128 = vld [vmem:[#allocation2 + $0x320] sm:$0xff]
    %v129 = vld [vmem:[#allocation2 + $0x328] sm:$0xff]
    %v130 = vld [vmem:[#allocation2 + $0x330] sm:$0xff]
    %v131 = vld [vmem:[#allocation2 + $0x338] sm:$0xff]
    %v132 = vld [vmem:[#allocation2 + $0x340] sm:$0xff]
    %v133 = vld [vmem:[#allocation2 + $0x348] sm:$0xff]
    %v134 = vld [vmem:[#allocation2 + $0x350] sm:$0xff]
    %v135 = vld [vmem:[#allocation2 + $0x358] sm:$0xff]
    %v136 = vld [vmem:[#allocation2 + $0x360] sm:$0xff]
    %v137 = vld [vmem:[#allocation2 + $0x368] sm:$0xff]
    %v138 = vld [vmem:[#allocation2 + $0x370] sm:$0xff]
    %v139 = vld [vmem:[#allocation2 + $0x378] sm:$0xff]
    %v140 = vld [vmem:[#allocation2 + $0x380] sm:$0xff]
    %v141 = vld [vmem:[#allocation2 + $0x388] sm:$0xff]
    %v142 = vld [vmem:[#allocation2 + $0x390] sm:$0xff]
    %v143 = vld [vmem:[#allocation2 + $0x398] sm:$0xff]
    %v144 = vld [vmem:[#allocation2 + $0x3a0] sm:$0xff]
    %v145 = vld [vmem:[#allocation2 + $0x3a8] sm:$0xff]
    %v146 = vld [vmem:[#allocation2 + $0x3b0] sm:$0xff]
    %v147 = vld [vmem:[#allocation2 + $0x3b8] sm:$0xff]
    %v148 = vld [vmem:[#allocation2 + $0x3c0] sm:$0xff]
    %v149 = vld [vmem:[#allocation2 + $0x3c8] sm:$0xff]
    %v150 = vld [vmem:[#allocation2 + $0x3d0] sm:$0xff]
    %v151 = vld [vmem:[#allocation2 + $0x3d8] sm:$0xff]
    %v152 = vld [vmem:[#allocation2 + $0x3e0] sm:$0xff]
    %v153 = vld [vmem:[#allocation2 + $0x3e8] sm:$0xff]
    %v154 = vld [vmem:[#allocation2 + $0x3f0] sm:$0xff]
    %v155 = vld [vmem:[#allocation2 + $0x3f8] sm:$0xff]
    %v156 = vld [vmem:[#allocation2 + $0x400] sm:$0xff]
    %v157 = vld [vmem:[#allocation2 + $0x408] sm:$0xff]
    %v158 = vld [vmem:[#allocation2 + $0x410] sm:$0xff]
    %v159 = vld [vmem:[#allocation2 + $0x418] sm:$0xff]
    %v160 = vld [vmem:[#allocation2 + $0x420] sm:$0xff]
    %v161 = vld [vmem:[#allocation2 + $0x428] sm:$0xff]
    %v162 = vld [vmem:[#allocation2 + $0x430] sm:$0xff]
    %v163 = vld [vmem:[#allocation2 + $0x438] sm:$0xff]
    %v164 = vld [vmem:[#allocation2 + $0x440] sm:$0xff]
    %v165 = vld [vmem:[#allocation2 + $0x448] sm:$0xff]
    %v166 = vld [vmem:[#allocation2 + $0x450] sm:$0xff]
    %v167 = vld [vmem:[#allocation2 + $0x458] sm:$0xff]
    %v168 = vld [vmem:[#allocation2 + $0x460] sm:$0xff]
    %v169 = vld [vmem:[#allocation2 + $0x468] sm:$0xff]
    %v170 = vld [vmem:[#allocation2 + $0x470] sm:$0xff]
    %v171 = vld [vmem:[#allocation2 + $0x478] sm:$0xff]
    %v172 = vld [vmem:[#allocation2 + $0x480] sm:$0xff]
    %v173 = vld [vmem:[#allocation2 + $0x488] sm:$0xff]
    %v174 = vld [vmem:[#allocation2 + $0x490] sm:$0xff]
    %v175 = vld [vmem:[#allocation2 + $0x498] sm:$0xff]
    %v176 = vld [vmem:[#allocation2 + $0x4a0] sm:$0xff]
    %v177 = vld [vmem:[#allocation2 + $0x4a8] sm:$0xff]
    %v178 = vld [vmem:[#allocation2 + $0x4b0] sm:$0xff]
    %v179 = vld [vmem:[#allocation2 + $0x4b8] sm:$0xff]
    %v180 = vld [vmem:[#allocation2 + $0x4c0] sm:$0xff]
    %v181 = vld [vmem:[#allocation2 + $0x4c8] sm:$0xff]
    %v182 = vld [vmem:[#allocation2 + $0x4d0] sm:$0xff]
    %v183 = vld [vmem:[#allocation2 + $0x4d8] sm:$0xff]
    %v184 = vld [vmem:[#allocation2 + $0x4e0] sm:$0xff]
    %v185 = vld [vmem:[#allocation2 + $0x4e8] sm:$0xff]
    %v186 = vld [vmem:[#allocation2 + $0x4f0] sm:$0xff]
    %v187 = vld [vmem:[#allocation2 + $0x4f8] sm:$0xff]
    %v188 = vld [vmem:[#allocation2 + $0x500] sm:$0xff]
    %v189 = vld [vmem:[#allocation2 + $0x508] sm:$0xff]
    %v190 = vld [vmem:[#allocation2 + $0x510] sm:$0xff]
    %v191 = vld [vmem:[#allocation2 + $0x518] sm:$0xff]
    %v192 = vld [vmem:[#allocation2 + $0x520] sm:$0xff]
    %v193 = vld [vmem:[#allocation2 + $0x528] sm:$0xff]
    %v194 = vld [vmem:[#allocation2 + $0x530] sm:$0xff]
    %v195 = vld [vmem:[#allocation2 + $0x538] sm:$0xff]
    %v196 = vld [vmem:[#allocation2 + $0x540] sm:$0xff]
    %v197 = vld [vmem:[#allocation2 + $0x548] sm:$0xff]
    %v198 = vld [vmem:[#allocation2 + $0x550] sm:$0xff]
    %v199 = vld [vmem:[#allocation2 + $0x558] sm:$0xff]
    %v200 = vld [vmem:[#allocation2 + $0x560] sm:$0xff]
    %v201 = vld [vmem:[#allocation2 + $0x568] sm:$0xff]
    %v202 = vld [vmem:[#allocation2 + $0x570] sm:$0xff]
    %v203 = vld [vmem:[#allocation2 + $0x578] sm:$0xff]
    %v204 = vld [vmem:[#allocation2 + $0x580] sm:$0xff]
    %v205 = vld [vmem:[#allocation2 + $0x588] sm:$0xff]
    %v206 = vld [vmem:[#allocation2 + $0x590] sm:$0xff]
    %v207 = vld [vmem:[#allocation2 + $0x598] sm:$0xff]
    %v208 = vld [vmem:[#allocation2 + $0x5a0] sm:$0xff]
    %v209 = vld [vmem:[#allocation2 + $0x5a8] sm:$0xff]
    %v210 = vld [vmem:[#allocation2 + $0x5b0] sm:$0xff]
    %v211 = vld [vmem:[#allocation2 + $0x5b8] sm:$0xff]
    %v212 = vld [vmem:[#allocation2 + $0x5c0] sm:$0xff]
    %v213 = vld [vmem:[#allocation2 + $0x5c8] sm:$0xff]
    %v214 = vld [vmem:[#allocation2 + $0x5d0] sm:$0xff]
    %v215 = vld [vmem:[#allocation2 + $0x5d8] sm:$0xff]
    %v216 = vld [vmem:[#allocation2 + $0x5e0] sm:$0xff]
    %v217 = vld [vmem:[#allocation2 + $0x5e8] sm:$0xff]
    %v218 = vld [vmem:[#allocation2 + $0x5f0] sm:$0xff]
    %v219 = vld [vmem:[#allocation2 + $0x5f8] sm:$0xff]
    %v220 = vld [vmem:[#allocation2 + $0x600] sm:$0xff]
    %v221 = vld [vmem:[#allocation2 + $0x608] sm:$0xff]
    %v222 = vld [vmem:[#allocation2 + $0x610] sm:$0xff]
    %v223 = vld [vmem:[#allocation2 + $0x618] sm:$0xff]
    %v224 = vld [vmem:[#allocation2 + $0x620] sm:$0xff]
    %v225 = vld [vmem:[#allocation2 + $0x628] sm:$0xff]
    %v226 = vld [vmem:[#allocation2 + $0x630] sm:$0xff]
    %v227 = vld [vmem:[#allocation2 + $0x638] sm:$0xff]
    %v228 = vld [vmem:[#allocation2 + $0x640] sm:$0xff]
    %v229 = vld [vmem:[#allocation2 + $0x648] sm:$0xff]
    %v230 = vld [vmem:[#allocation2 + $0x650] sm:$0xff]
    %v231 = vld [vmem:[#allocation2 + $0x658] sm:$0xff]
    %v232 = vld [vmem:[#allocation2 + $0x660] sm:$0xff]
    %v233 = vld [vmem:[#allocation2 + $0x668] sm:$0xff]
    %v234 = vld [vmem:[#allocation2 + $0x670] sm:$0xff]
    %v235 = vld [vmem:[#allocation2 + $0x678] sm:$0xff]
    %v236 = vld [vmem:[#allocation2 + $0x680] sm:$0xff]
    %v237 = vld [vmem:[#allocation2 + $0x688] sm:$0xff]
    %v238 = vld [vmem:[#allocation2 + $0x690] sm:$0xff]
    %v239 = vld [vmem:[#allocation2 + $0x698] sm:$0xff]
    %v240 = vld [vmem:[#allocation2 + $0x6a0] sm:$0xff]
    %v241 = vld [vmem:[#allocation2 + $0x6a8] sm:$0xff]
    %v242 = vld [vmem:[#allocation2 + $0x6b0] sm:$0xff]
    %v243 = vld [vmem:[#allocation2 + $0x6b8] sm:$0xff]
    %v244 = vld [vmem:[#allocation2 + $0x6c0] sm:$0xff]
    %v245 = vld [vmem:[#allocation2 + $0x6c8] sm:$0xff]
    %v246 = vld [vmem:[#allocation2 + $0x6d0] sm:$0xff]
    %v247 = vld [vmem:[#allocation2 + $0x6d8] sm:$0xff]
    %v248 = vld [vmem:[#allocation2 + $0x6e0] sm:$0xff]
    %v249 = vld [vmem:[#allocation2 + $0x6e8] sm:$0xff]
    %v250 = vld [vmem:[#allocation2 + $0x6f0] sm:$0xff]
    %v251 = vld [vmem:[#allocation2 + $0x6f8] sm:$0xff]
    %v252 = vld [vmem:[#allocation2 + $0x700] sm:$0xff]
    %v253 = vld [vmem:[#allocation2 + $0x708] sm:$0xff]
    %v254 = vld [vmem:[#allocation2 + $0x710] sm:$0xff]
    %v255 = vld [vmem:[#allocation2 + $0x718] sm:$0xff]
    %v256 = vld [vmem:[#allocation2 + $0x720] sm:$0xff]
    %v257 = vld [vmem:[#allocation2 + $0x728] sm:$0xff]
    %v258 = vld [vmem:[#allocation2 + $0x730] sm:$0xff]
    %v259 = vld [vmem:[#allocation2 + $0x738] sm:$0xff]
    %v260 = vld [vmem:[#allocation2 + $0x740] sm:$0xff]
    %v261 = vld [vmem:[#allocation2 + $0x748] sm:$0xff]
    %v262 = vld [vmem:[#allocation2 + $0x750] sm:$0xff]
    %v263 = vld [vmem:[#allocation2 + $0x758] sm:$0xff]
    %v264 = vld [vmem:[#allocation2 + $0x760] sm:$0xff]
    %v265 = vld [vmem:[#allocation2 + $0x768] sm:$0xff]
    %v266 = vld [vmem:[#allocation2 + $0x770] sm:$0xff]
    %v267 = vld [vmem:[#allocation2 + $0x778] sm:$0xff]
    %v268 = vld [vmem:[#allocation2 + $0x780] sm:$0xff]
    %v269 = vld [vmem:[#allocation2 + $0x788] sm:$0xff]
    %v270 = vld [vmem:[#allocation2 + $0x790] sm:$0xff]
    %v271 = vld [vmem:[#allocation2 + $0x798] sm:$0xff]
    %v272 = vld [vmem:[#allocation2 + $0x7a0] sm:$0xff]
    %v273 = vld [vmem:[#allocation2 + $0x7a8] sm:$0xff]
    %v274 = vld [vmem:[#allocation2 + $0x7b0] sm:$0xff]
    %v275 = vld [vmem:[#allocation2 + $0x7b8] sm:$0xff]
    %v276 = vld [vmem:[#allocation2 + $0x7c0] sm:$0xff]
    %v277 = vld [vmem:[#allocation2 + $0x7c8] sm:$0xff]
    %v278 = vld [vmem:[#allocation2 + $0x7d0] sm:$0xff]
    %v279 = vld [vmem:[#allocation2 + $0x7d8] sm:$0xff]
    %v280 = vld [vmem:[#allocation2 + $0x7e0] sm:$0xff]
    %v281 = vld [vmem:[#allocation2 + $0x7e8] sm:$0xff]
    %v282 = vld [vmem:[#allocation2 + $0x7f0] sm:$0xff]
    %v283 = vld [vmem:[#allocation2 + $0x7f8] sm:$0xff]
    %v284 = vld [vmem:[#allocation2 + $0x800] sm:$0xff]
    %v285 = vld [vmem:[#allocation2 + $0x808] sm:$0xff]
    %v286 = vld [vmem:[#allocation2 + $0x810] sm:$0xff]
    %v287 = vld [vmem:[#allocation2 + $0x818] sm:$0xff]
    %v288 = vld [vmem:[#allocation2 + $0x820] sm:$0xff]
    %v289 = vld [vmem:[#allocation2 + $0x828] sm:$0xff]
    %v290 = vld [vmem:[#allocation2 + $0x830] sm:$0xff]
    %v291 = vld [vmem:[#allocation2 + $0x838] sm:$0xff]
    %v292 = vld [vmem:[#allocation2 + $0x840] sm:$0xff]
    %v293 = vld [vmem:[#allocation2 + $0x848] sm:$0xff]
    %v294 = vld [vmem:[#allocation2 + $0x850] sm:$0xff]
    %v295 = vld [vmem:[#allocation2 + $0x858] sm:$0xff]
    %v296 = vld [vmem:[#allocation2 + $0x860] sm:$0xff]
    %v297 = vld [vmem:[#allocation2 + $0x868] sm:$0xff]
    %v298 = vld [vmem:[#allocation2 + $0x870] sm:$0xff]
    %v299 = vld [vmem:[#allocation2 + $0x878] sm:$0xff]
    %v300 = vld [vmem:[#allocation2 + $0x880] sm:$0xff]
    %v301 = vld [vmem:[#allocation2 + $0x888] sm:$0xff]
    %v302 = vld [vmem:[#allocation2 + $0x890] sm:$0xff]
    %v303 = vld [vmem:[#allocation2 + $0x898] sm:$0xff]
    %v304 = vld [vmem:[#allocation2 + $0x8a0] sm:$0xff]
    %v305 = vld [vmem:[#allocation2 + $0x8a8] sm:$0xff]
    %v306 = vld [vmem:[#allocation2 + $0x8b0] sm:$0xff]
    %v307 = vld [vmem:[#allocation2 + $0x8b8] sm:$0xff]
    %v308 = vld [vmem:[#allocation2 + $0x8c0] sm:$0xff]
    %v309 = vld [vmem:[#allocation2 + $0x8c8] sm:$0xff]
    %v310 = vld [vmem:[#allocation2 + $0x8d0] sm:$0xff]
    %v311 = vld [vmem:[#allocation2 + $0x8d8] sm:$0xff]
    %v312 = vld [vmem:[#allocation2 + $0x8e0] sm:$0xff]
    %v313 = vld [vmem:[#allocation2 + $0x8e8] sm:$0xff]
    %v314 = vld [vmem:[#allocation2 + $0x8f0] sm:$0xff]
    %v315 = vld [vmem:[#allocation2 + $0x8f8] sm:$0xff]
    %v316 = vld [vmem:[#allocation2 + $0x900] sm:$0xff]
    %v317 = vld [vmem:[#allocation2 + $0x908] sm:$0xff]
    %v318 = vld [vmem:[#allocation2 + $0x910] sm:$0xff]
    %v319 = vld [vmem:[#allocation2 + $0x918] sm:$0xff]
    %v320 = vld [vmem:[#allocation2 + $0x920] sm:$0xff]
    %v321 = vld [vmem:[#allocation2 + $0x928] sm:$0xff]
    %v322 = vld [vmem:[#allocation2 + $0x930] sm:$0xff]
    %v323 = vld [vmem:[#allocation2 + $0x938] sm:$0xff]
    %v324 = vld [vmem:[#allocation2 + $0x940] sm:$0xff]
    %v325 = vld [vmem:[#allocation2 + $0x948] sm:$0xff]
    %v326 = vld [vmem:[#allocation2 + $0x950] sm:$0xff]
    %v327 = vld [vmem:[#allocation2 + $0x958] sm:$0xff]
    %v328 = vld [vmem:[#allocation2 + $0x960] sm:$0xff]
    %v329 = vld [vmem:[#allocation2 + $0x968] sm:$0xff]
    %v330 = vld [vmem:[#allocation2 + $0x970] sm:$0xff]
    %v331 = vld [vmem:[#allocation2 + $0x978] sm:$0xff]
    %v332 = vld [vmem:[#allocation2 + $0x980] sm:$0xff]
    %v333 = vld [vmem:[#allocation2 + $0x988] sm:$0xff]
    %v334 = vld [vmem:[#allocation2 + $0x990] sm:$0xff]
    %v335 = vld [vmem:[#allocation2 + $0x998] sm:$0xff]
    %v336 = vld [vmem:[#allocation2 + $0x9a0] sm:$0xff]
    %v337 = vld [vmem:[#allocation2 + $0x9a8] sm:$0xff]
    %v338 = vld [vmem:[#allocation2 + $0x9b0] sm:$0xff]
    %v339 = vld [vmem:[#allocation2 + $0x9b8] sm:$0xff]
    %v340 = vld [vmem:[#allocation2 + $0x9c0] sm:$0xff]
    %v341 = vld [vmem:[#allocation2 + $0x9c8] sm:$0xff]
    %v342 = vld [vmem:[#allocation2 + $0x9d0] sm:$0xff]
    %v343 = vld [vmem:[#allocation2 + $0x9d8] sm:$0xff]
    %v344 = vld [vmem:[#allocation2 + $0x9e0] sm:$0xff]
    %v345 = vld [vmem:[#allocation2 + $0x9e8] sm:$0xff]
    %v346 = vld [vmem:[#allocation2 + $0x9f0] sm:$0xff]
    %v347 = vld [vmem:[#allocation2 + $0x9f8] sm:$0xff]
    %v348 = vld [vmem:[#allocation2 + $0xa00] sm:$0xff]
    %v349 = vld [vmem:[#allocation2 + $0xa08] sm:$0xff]
    %v350 = vld [vmem:[#allocation2 + $0xa10] sm:$0xff]
    %v351 = vld [vmem:[#allocation2 + $0xa18] sm:$0xff]
    %v352 = vld [vmem:[#allocation2 + $0xa20] sm:$0xff]
    %v353 = vld [vmem:[#allocation2 + $0xa28] sm:$0xff]
    %v354 = vld [vmem:[#allocation2 + $0xa30] sm:$0xff]
    %v355 = vld [vmem:[#allocation2 + $0xa38] sm:$0xff]
    %v356 = vld [vmem:[#allocation2 + $0xa40] sm:$0xff]
    %v357 = vld [vmem:[#allocation2 + $0xa48] sm:$0xff]
    %v358 = vld [vmem:[#allocation2 + $0xa50] sm:$0xff]
    %v359 = vld [vmem:[#allocation2 + $0xa58] sm:$0xff]
    %v360 = vld [vmem:[#allocation2 + $0xa60] sm:$0xff]
    %v361 = vld [vmem:[#allocation2 + $0xa68] sm:$0xff]
    %v362 = vld [vmem:[#allocation2 + $0xa70] sm:$0xff]
    %v363 = vld [vmem:[#allocation2 + $0xa78] sm:$0xff]
    %v364 = vld [vmem:[#allocation2 + $0xa80] sm:$0xff]
    %v365 = vld [vmem:[#allocation2 + $0xa88] sm:$0xff]
    %v366 = vld [vmem:[#allocation2 + $0xa90] sm:$0xff]
    %v367 = vld [vmem:[#allocation2 + $0xa98] sm:$0xff]
    %v368 = vld [vmem:[#allocation2 + $0xaa0] sm:$0xff]
    %v369 = vld [vmem:[#allocation2 + $0xaa8] sm:$0xff]
    %v370 = vld [vmem:[#allocation2 + $0xab0] sm:$0xff]
    %v371 = vld [vmem:[#allocation2 + $0xab8] sm:$0xff]
    %v372 = vld [vmem:[#allocation2 + $0xac0] sm:$0xff]
    %v373 = vld [vmem:[#allocation2 + $0xac8] sm:$0xff]
    %v374 = vld [vmem:[#allocation2 + $0xad0] sm:$0xff]
    %v375 = vld [vmem:[#allocation2 + $0xad8] sm:$0xff]
    %v376 = vld [vmem:[#allocation2 + $0xae0] sm:$0xff]
    %v377 = vld [vmem:[#allocation2 + $0xae8] sm:$0xff]
    %v378 = vld [vmem:[#allocation2 + $0xaf0] sm:$0xff]
    %v379 = vld [vmem:[#allocation2 + $0xaf8] sm:$0xff]
    %v380 = vld [vmem:[#allocation2 + $0xb00] sm:$0xff]
    %v381 = vld [vmem:[#allocation2 + $0xb08] sm:$0xff]
    %v382 = vld [vmem:[#allocation2 + $0xb10] sm:$0xff]
    %v383 = vld [vmem:[#allocation2 + $0xb18] sm:$0xff]
    %v384 = vld [vmem:[#allocation2 + $0xb20] sm:$0xff]
    %v385 = vld [vmem:[#allocation2 + $0xb28] sm:$0xff]
    %v386 = vld [vmem:[#allocation2 + $0xb30] sm:$0xff]
    %v387 = vld [vmem:[#allocation2 + $0xb38] sm:$0xff]
    %v388 = vld [vmem:[#allocation2 + $0xb40] sm:$0xff]
    %v389 = vld [vmem:[#allocation2 + $0xb48] sm:$0xff]
    %v390 = vld [vmem:[#allocation2 + $0xb50] sm:$0xff]
    %v391 = vld [vmem:[#allocation2 + $0xb58] sm:$0xff]
    %v392 = vld [vmem:[#allocation2 + $0xb60] sm:$0xff]
    %v393 = vld [vmem:[#allocation2 + $0xb68] sm:$0xff]
    %v394 = vld [vmem:[#allocation2 + $0xb70] sm:$0xff]
    %v395 = vld [vmem:[#allocation2 + $0xb78] sm:$0xff]
    %v396 = vld [vmem:[#allocation2 + $0xb80] sm:$0xff]
    %v397 = vld [vmem:[#allocation2 + $0xb88] sm:$0xff]
    %v398 = vld [vmem:[#allocation2 + $0xb90] sm:$0xff]
    %v399 = vld [vmem:[#allocation2 + $0xb98] sm:$0xff]
    %v400 = vld [vmem:[#allocation2 + $0xba0] sm:$0xff]
    %v401 = vld [vmem:[#allocation2 + $0xba8] sm:$0xff]
    %v402 = vld [vmem:[#allocation2 + $0xbb0] sm:$0xff]
    %v403 = vld [vmem:[#allocation2 + $0xbb8] sm:$0xff]
    %v404 = vld [vmem:[#allocation2 + $0xbc0] sm:$0xff]
    %v405 = vld [vmem:[#allocation2 + $0xbc8] sm:$0xff]
    %v406 = vld [vmem:[#allocation2 + $0xbd0] sm:$0xff]
    %v407 = vld [vmem:[#allocation2 + $0xbd8] sm:$0xff]
    %v408 = vld [vmem:[#allocation2 + $0xbe0] sm:$0xff]
    %v409 = vld [vmem:[#allocation2 + $0xbe8] sm:$0xff]
    %v410 = vld [vmem:[#allocation2 + $0xbf0] sm:$0xff]
    %v411 = vld [vmem:[#allocation2 + $0xbf8] sm:$0xff]
    %v412 = vld [vmem:[#allocation2 + $0xc00] sm:$0xff]
    %v413 = vld [vmem:[#allocation2 + $0xc08] sm:$0xff]
    %v414 = vld [vmem:[#allocation2 + $0xc10] sm:$0xff]
    %v415 = vld [vmem:[#allocation2 + $0xc18] sm:$0xff]
    %v416 = vld [vmem:[#allocation2 + $0xc20] sm:$0xff]
    %v417 = vld [vmem:[#allocation2 + $0xc28] sm:$0xff]
    %v418 = vld [vmem:[#allocation2 + $0xc30] sm:$0xff]
    %v419 = vld [vmem:[#allocation2 + $0xc38] sm:$0xff]
    %v420 = vld [vmem:[#allocation2 + $0xc40] sm:$0xff]
    %v421 = vld [vmem:[#allocation2 + $0xc48] sm:$0xff]
    %v422 = vld [vmem:[#allocation2 + $0xc50] sm:$0xff]
    %v423 = vld [vmem:[#allocation2 + $0xc58] sm:$0xff]
    %v424 = vld [vmem:[#allocation2 + $0xc60] sm:$0xff]
    %v425 = vld [vmem:[#allocation2 + $0xc68] sm:$0xff]
    %v426 = vld [vmem:[#allocation2 + $0xc70] sm:$0xff]
    %v427 = vld [vmem:[#allocation2 + $0xc78] sm:$0xff]
    %v428 = vld [vmem:[#allocation2 + $0xc80] sm:$0xff]
    %v429 = vld [vmem:[#allocation2 + $0xc88] sm:$0xff]
    %v430 = vld [vmem:[#allocation2 + $0xc90] sm:$0xff]
    %v431 = vld [vmem:[#allocation2 + $0xc98] sm:$0xff]
    %v432 = vld [vmem:[#allocation2 + $0xca0] sm:$0xff]
    %v433 = vld [vmem:[#allocation2 + $0xca8] sm:$0xff]
    %v434 = vld [vmem:[#allocation2 + $0xcb0] sm:$0xff]
    %v435 = vld [vmem:[#allocation2 + $0xcb8] sm:$0xff]
    %v436 = vld [vmem:[#allocation2 + $0xcc0] sm:$0xff]
    %v437 = vld [vmem:[#allocation2 + $0xcc8] sm:$0xff]
    %v438 = vld [vmem:[#allocation2 + $0xcd0] sm:$0xff]
    %v439 = vld [vmem:[#allocation2 + $0xcd8] sm:$0xff]
    %v440 = vld [vmem:[#allocation2 + $0xce0] sm:$0xff]
    %v441 = vld [vmem:[#allocation2 + $0xce8] sm:$0xff]
    %v442 = vld [vmem:[#allocation2 + $0xcf0] sm:$0xff]
    %v443 = vld [vmem:[#allocation2 + $0xcf8] sm:$0xff]
    %v444 = vld [vmem:[#allocation2 + $0xd00] sm:$0xff]
    %v445 = vld [vmem:[#allocation2 + $0xd08] sm:$0xff]
    %v446 = vld [vmem:[#allocation2 + $0xd10] sm:$0xff]
    %v447 = vld [vmem:[#allocation2 + $0xd18] sm:$0xff]
    %v448 = vld [vmem:[#allocation2 + $0xd20] sm:$0xff]
    %v449 = vld [vmem:[#allocation2 + $0xd28] sm:$0xff]
    %v450 = vld [vmem:[#allocation2 + $0xd30] sm:$0xff]
    %v451 = vld [vmem:[#allocation2 + $0xd38] sm:$0xff]
    %v452 = vld [vmem:[#allocation2 + $0xd40] sm:$0xff]
    %v453 = vld [vmem:[#allocation2 + $0xd48] sm:$0xff]
    %v454 = vld [vmem:[#allocation2 + $0xd50] sm:$0xff]
    %v455 = vld [vmem:[#allocation2 + $0xd58] sm:$0xff]
    %v456 = vld [vmem:[#allocation2 + $0xd60] sm:$0xff]
    %v457 = vld [vmem:[#allocation2 + $0xd68] sm:$0xff]
    %v458 = vld [vmem:[#allocation2 + $0xd70] sm:$0xff]
    %v459 = vld [vmem:[#allocation2 + $0xd78] sm:$0xff]
    %v460 = vld [vmem:[#allocation2 + $0xd80] sm:$0xff]
    %v461 = vld [vmem:[#allocation2 + $0xd88] sm:$0xff]
    %v462 = vld [vmem:[#allocation2 + $0xd90] sm:$0xff]
    %v463 = vld [vmem:[#allocation2 + $0xd98] sm:$0xff]
    %v464 = vld [vmem:[#allocation2 + $0xda0] sm:$0xff]
    %v465 = vld [vmem:[#allocation2 + $0xda8] sm:$0xff]
    %v466 = vld [vmem:[#allocation2 + $0xdb0] sm:$0xff]
    %v467 = vld [vmem:[#allocation2 + $0xdb8] sm:$0xff]
    %v468 = vld [vmem:[#allocation2 + $0xdc0] sm:$0xff]
    %v469 = vld [vmem:[#allocation2 + $0xdc8] sm:$0xff]
    %v470 = vld [vmem:[#allocation2 + $0xdd0] sm:$0xff]
    %v471 = vld [vmem:[#allocation2 + $0xdd8] sm:$0xff]
    %v472 = vld [vmem:[#allocation2 + $0xde0] sm:$0xff]
    %v473 = vld [vmem:[#allocation2 + $0xde8] sm:$0xff]
    %v474 = vld [vmem:[#allocation2 + $0xdf0] sm:$0xff]
    %v475 = vld [vmem:[#allocation2 + $0xdf8] sm:$0xff]
    %v476 = vld [vmem:[#allocation2 + $0xe00] sm:$0xff]
    %v477 = vld [vmem:[#allocation2 + $0xe08] sm:$0xff]
    %v478 = vld [vmem:[#allocation2 + $0xe10] sm:$0xff]
    %v479 = vld [vmem:[#allocation2 + $0xe18] sm:$0xff]
    %v480 = vld [vmem:[#allocation2 + $0xe20] sm:$0xff]
    %v481 = vld [vmem:[#allocation2 + $0xe28] sm:$0xff]
    %v482 = vld [vmem:[#allocation2 + $0xe30] sm:$0xff]
    %v483 = vld [vmem:[#allocation2 + $0xe38] sm:$0xff]
    %v484 = vld [vmem:[#allocation2 + $0xe40] sm:$0xff]
    %v485 = vld [vmem:[#allocation2 + $0xe48] sm:$0xff]
    %v486 = vld [vmem:[#allocation2 + $0xe50] sm:$0xff]
    %v487 = vld [vmem:[#allocation2 + $0xe58] sm:$0xff]
    %v488 = vld [vmem:[#allocation2 + $0xe60] sm:$0xff]
    %v489 = vld [vmem:[#allocation2 + $0xe68] sm:$0xff]
    %v490 = vld [vmem:[#allocation2 + $0xe70] sm:$0xff]
    %v491 = vld [vmem:[#allocation2 + $0xe78] sm:$0xff]
    %v492 = vld [vmem:[#allocation2 + $0xe80] sm:$0xff]
    %v493 = vld [vmem:[#allocation2 + $0xe88] sm:$0xff]
    %v494 = vld [vmem:[#allocation2 + $0xe90] sm:$0xff]
    %v495 = vld [vmem:[#allocation2 + $0xe98] sm:$0xff]
    %v496 = vld [vmem:[#allocation2 + $0xea0] sm:$0xff]
    %v497 = vld [vmem:[#allocation2 + $0xea8] sm:$0xff]
    %v498 = vld [vmem:[#allocation2 + $0xeb0] sm:$0xff]
    %v499 = vld [vmem:[#allocation2 + $0xeb8] sm:$0xff]
    %v500 = vld [vmem:[#allocation2 + $0xec0] sm:$0xff]
    %v501 = vld [vmem:[#allocation2 + $0xec8] sm:$0xff]
    %v502 = vld [vmem:[#allocation2 + $0xed0] sm:$0xff]
    %v503 = vld [vmem:[#allocation2 + $0xed8] sm:$0xff]
    %v504 = vld [vmem:[#allocation2 + $0xee0] sm:$0xff]
    %v505 = vld [vmem:[#allocation2 + $0xee8] sm:$0xff]
    %v506 = vld [vmem:[#allocation2 + $0xef0] sm:$0xff]
    %v507 = vld [vmem:[#allocation2 + $0xef8] sm:$0xff]
    %v508 = vld [vmem:[#allocation2 + $0xf00] sm:$0xff]
    %v509 = vld [vmem:[#allocation2 + $0xf08] sm:$0xff]
    %v510 = vld [vmem:[#allocation2 + $0xf10] sm:$0xff]
    %v511 = vld [vmem:[#allocation2 + $0xf18] sm:$0xff]
    %v512 = vld [vmem:[#allocation2 + $0xf20] sm:$0xff]
    %v513 = vld [vmem:[#allocation2 + $0xf28] sm:$0xff]
    %v514 = vld [vmem:[#allocation2 + $0xf30] sm:$0xff]
    %v515 = vld [vmem:[#allocation2 + $0xf38] sm:$0xff]
    %v516 = vld [vmem:[#allocation2 + $0xf40] sm:$0xff]
    %v517 = vld [vmem:[#allocation2 + $0xf48] sm:$0xff]
    %v518 = vld [vmem:[#allocation2 + $0xf50] sm:$0xff]
    %v519 = vld [vmem:[#allocation2 + $0xf58] sm:$0xff]
    %v520 = vld [vmem:[#allocation2 + $0xf60] sm:$0xff]
    %v521 = vld [vmem:[#allocation2 + $0xf68] sm:$0xff]
    %v522 = vld [vmem:[#allocation2 + $0xf70] sm:$0xff]
    %v523 = vld [vmem:[#allocation2 + $0xf78] sm:$0xff]
    %v524 = vld [vmem:[#allocation2 + $0xf80] sm:$0xff]
    %v525 = vld [vmem:[#allocation2 + $0xf88] sm:$0xff]
    %v526 = vld [vmem:[#allocation2 + $0xf90] sm:$0xff]
    %v527 = vld [vmem:[#allocation2 + $0xf98] sm:$0xff]
    %v528 = vld [vmem:[#allocation2 + $0xfa0] sm:$0xff]
    %v529 = vld [vmem:[#allocation2 + $0xfa8] sm:$0xff]
    %v530 = vld [vmem:[#allocation2 + $0xfb0] sm:$0xff]
    %v531 = vld [vmem:[#allocation2 + $0xfb8] sm:$0xff]
    %v532 = vld [vmem:[#allocation2 + $0xfc0] sm:$0xff]
    %v533 = vld [vmem:[#allocation2 + $0xfc8] sm:$0xff]
    %v534 = vld [vmem:[#allocation2 + $0xfd0] sm:$0xff]
    %v535 = vld [vmem:[#allocation2 + $0xfd8] sm:$0xff]
    %v536 = vld [vmem:[#allocation2 + $0xfe0] sm:$0xff]
    %v537 = vld [vmem:[#allocation2 + $0xfe8] sm:$0xff]
    %v538 = vld [vmem:[#allocation2 + $0xff0] sm:$0xff]
    %v539 = vld [vmem:[#allocation2 + $0xff8] sm:$0xff]
    %v540 = vld [vmem:[#allocation2 + $0x1000] sm:$0xff]
    %v541 = vld [vmem:[#allocation2 + $0x1008] sm:$0xff]
    %v542 = vld [vmem:[#allocation2 + $0x1010] sm:$0xff]
    %v543 = vld [vmem:[#allocation2 + $0x1018] sm:$0xff]
    %v544 = vld [vmem:[#allocation2 + $0x1020] sm:$0xff]
    %v545 = vld [vmem:[#allocation2 + $0x1028] sm:$0xff]
    %v546 = vld [vmem:[#allocation2 + $0x1030] sm:$0xff]
    %v547 = vld [vmem:[#allocation2 + $0x1038] sm:$0xff]
    %v548 = vld [vmem:[#allocation2 + $0x1040] sm:$0xff]
    %v549 = vld [vmem:[#allocation2 + $0x1048] sm:$0xff]
    %v550 = vld [vmem:[#allocation2 + $0x1050] sm:$0xff]
    %v551 = vld [vmem:[#allocation2 + $0x1058] sm:$0xff]
    %v552 = vld [vmem:[#allocation2 + $0x1060] sm:$0xff]
    %v553 = vld [vmem:[#allocation2 + $0x1068] sm:$0xff]
    %v554 = vld [vmem:[#allocation2 + $0x1070] sm:$0xff]
    %v555 = vld [vmem:[#allocation2 + $0x1078] sm:$0xff]
    %v556 = vld [vmem:[#allocation2 + $0x1080] sm:$0xff]
    %v557 = vld [vmem:[#allocation2 + $0x1088] sm:$0xff]
    %v558 = vld [vmem:[#allocation2 + $0x1090] sm:$0xff]
    %v559 = vld [vmem:[#allocation2 + $0x1098] sm:$0xff]
    %v560 = vld [vmem:[#allocation2 + $0x10a0] sm:$0xff]
    %v561 = vld [vmem:[#allocation2 + $0x10a8] sm:$0xff]
    %v562 = vld [vmem:[#allocation2 + $0x10b0] sm:$0xff]
    %v563 = vld [vmem:[#allocation2 + $0x10b8] sm:$0xff]
    %v564 = vld [vmem:[#allocation2 + $0x10c0] sm:$0xff]
    %v565 = vld [vmem:[#allocation2 + $0x10c8] sm:$0xff]
    %v566 = vld [vmem:[#allocation2 + $0x10d0] sm:$0xff]
    %v567 = vld [vmem:[#allocation2 + $0x10d8] sm:$0xff]
    %v568 = vld [vmem:[#allocation2 + $0x10e0] sm:$0xff]
    %v569 = vld [vmem:[#allocation2 + $0x10e8] sm:$0xff]
    %v570 = vld [vmem:[#allocation2 + $0x10f0] sm:$0xff]
    %v571 = vld [vmem:[#allocation2 + $0x10f8] sm:$0xff]
    %v572 = vld [vmem:[#allocation2 + $0x1100] sm:$0xff]
    %v573 = vld [vmem:[#allocation2 + $0x1108] sm:$0xff]
    %v574 = vld [vmem:[#allocation2 + $0x1110] sm:$0xff]
    %v575 = vld [vmem:[#allocation2 + $0x1118] sm:$0xff]
    %v576 = vld [vmem:[#allocation2 + $0x1120] sm:$0xff]
    %v577 = vld [vmem:[#allocation2 + $0x1128] sm:$0xff]
    %v578 = vld [vmem:[#allocation2 + $0x1130] sm:$0xff]
    %v579 = vld [vmem:[#allocation2 + $0x1138] sm:$0xff]
    %v580 = vld [vmem:[#allocation2 + $0x1140] sm:$0xff]
    %v581 = vld [vmem:[#allocation2 + $0x1148] sm:$0xff]
    %v582 = vld [vmem:[#allocation2 + $0x1150] sm:$0xff]
    %v583 = vld [vmem:[#allocation2 + $0x1158] sm:$0xff]
    %v584 = vld [vmem:[#allocation2 + $0x1160] sm:$0xff]
    %v585 = vld [vmem:[#allocation2 + $0x1168] sm:$0xff]
    %v586 = vld [vmem:[#allocation2 + $0x1170] sm:$0xff]
    %v587 = vld [vmem:[#allocation2 + $0x1178] sm:$0xff]
    %v588 = vld [vmem:[#allocation2 + $0x1180] sm:$0xff]
    %v589 = vld [vmem:[#allocation2 + $0x1188] sm:$0xff]
    %v590 = vld [vmem:[#allocation2 + $0x1190] sm:$0xff]
    %v591 = vld [vmem:[#allocation2 + $0x1198] sm:$0xff]
    %v592 = vld [vmem:[#allocation2 + $0x11a0] sm:$0xff]
    %v593 = vld [vmem:[#allocation2 + $0x11a8] sm:$0xff]
    %v594 = vld [vmem:[#allocation2 + $0x11b0] sm:$0xff]
    %v595 = vld [vmem:[#allocation2 + $0x11b8] sm:$0xff]
    %v596 = vld [vmem:[#allocation2 + $0x11c0] sm:$0xff]
    %v597 = vld [vmem:[#allocation2 + $0x11c8] sm:$0xff]
    %v598 = vld [vmem:[#allocation2 + $0x11d0] sm:$0xff]
    %v599 = vld [vmem:[#allocation2 + $0x11d8] sm:$0xff]
    %v600 = vld [vmem:[#allocation2 + $0x11e0] sm:$0xff]
    %v601 = vld [vmem:[#allocation2 + $0x11e8] sm:$0xff]
    %v602 = vld [vmem:[#allocation2 + $0x11f0] sm:$0xff]
    %v603 = vld [vmem:[#allocation2 + $0x11f8] sm:$0xff]
    %v604 = vld [vmem:[#allocation2 + $0x1200] sm:$0xff]
    %v605 = vld [vmem:[#allocation2 + $0x1208] sm:$0xff]
    %v606 = vld [vmem:[#allocation2 + $0x1210] sm:$0xff]
    %v607 = vld [vmem:[#allocation2 + $0x1218] sm:$0xff]
    %v608 = vld [vmem:[#allocation2 + $0x1220] sm:$0xff]
    %v609 = vld [vmem:[#allocation2 + $0x1228] sm:$0xff]
    %v610 = vld [vmem:[#allocation2 + $0x1230] sm:$0xff]
    %v611 = vld [vmem:[#allocation2 + $0x1238] sm:$0xff]
    %v612 = vld [vmem:[#allocation2 + $0x1240] sm:$0xff]
    %v613 = vld [vmem:[#allocation2 + $0x1248] sm:$0xff]
    %v614 = vld [vmem:[#allocation2 + $0x1250] sm:$0xff]
    %v615 = vld [vmem:[#allocation2 + $0x1258] sm:$0xff]
    %v616 = vld [vmem:[#allocation2 + $0x1260] sm:$0xff]
    %v617 = vld [vmem:[#allocation2 + $0x1268] sm:$0xff]
    %v618 = vld [vmem:[#allocation2 + $0x1270] sm:$0xff]
    %v619 = vld [vmem:[#allocation2 + $0x1278] sm:$0xff]
    %v620 = vld [vmem:[#allocation2 + $0x1280] sm:$0xff]
    %v621 = vld [vmem:[#allocation2 + $0x1288] sm:$0xff]
    %v622 = vld [vmem:[#allocation2 + $0x1290] sm:$0xff]
    %v623 = vld [vmem:[#allocation2 + $0x1298] sm:$0xff]
    %v624 = vld [vmem:[#allocation2 + $0x12a0] sm:$0xff]
    %v625 = vld [vmem:[#allocation2 + $0x12a8] sm:$0xff]
    %v626 = vld [vmem:[#allocation2 + $0x12b0] sm:$0xff]
    %v627 = vld [vmem:[#allocation2 + $0x12b8] sm:$0xff]
    %v628 = vld [vmem:[#allocation2 + $0x12c0] sm:$0xff]
    %v629 = vld [vmem:[#allocation2 + $0x12c8] sm:$0xff]
    %v630 = vld [vmem:[#allocation2 + $0x12d0] sm:$0xff]
    %v631 = vld [vmem:[#allocation2 + $0x12d8] sm:$0xff]
    %v632 = vld [vmem:[#allocation2 + $0x12e0] sm:$0xff]
    %v633 = vld [vmem:[#allocation2 + $0x12e8] sm:$0xff]
    %v634 = vld [vmem:[#allocation2 + $0x12f0] sm:$0xff]
    %v635 = vld [vmem:[#allocation2 + $0x12f8] sm:$0xff]
    %v636 = vld [vmem:[#allocation2 + $0x1300] sm:$0xff]
    %v637 = vld [vmem:[#allocation2 + $0x1308] sm:$0xff]
    %v638 = vld [vmem:[#allocation2 + $0x1310] sm:$0xff]
    %v639 = vld [vmem:[#allocation2 + $0x1318] sm:$0xff]
    %v640 = vld [vmem:[#allocation2 + $0x1320] sm:$0xff]
    %v641 = vld [vmem:[#allocation2 + $0x1328] sm:$0xff]
    %v642 = vld [vmem:[#allocation2 + $0x1330] sm:$0xff]
    %v643 = vld [vmem:[#allocation2 + $0x1338] sm:$0xff]
    %v644 = vld [vmem:[#allocation2 + $0x1340] sm:$0xff]
    %v645 = vld [vmem:[#allocation2 + $0x1348] sm:$0xff]
    %v646 = vld [vmem:[#allocation2 + $0x1350] sm:$0xff]
    %v647 = vld [vmem:[#allocation2 + $0x1358] sm:$0xff]
    %v648 = vld [vmem:[#allocation2 + $0x1360] sm:$0xff]
    %v649 = vld [vmem:[#allocation2 + $0x1368] sm:$0xff]
    %v650 = vld [vmem:[#allocation2 + $0x1370] sm:$0xff]
    %v651 = vld [vmem:[#allocation2 + $0x1378] sm:$0xff]
    %v652 = vld [vmem:[#allocation2 + $0x1380] sm:$0xff]
    %v653 = vld [vmem:[#allocation2 + $0x1388] sm:$0xff]
    %v654 = vld [vmem:[#allocation2 + $0x1390] sm:$0xff]
    %v655 = vld [vmem:[#allocation2 + $0x1398] sm:$0xff]
    %v656 = vld [vmem:[#allocation2 + $0x13a0] sm:$0xff]
    %v657 = vld [vmem:[#allocation2 + $0x13a8] sm:$0xff]
    %v658 = vld [vmem:[#allocation2 + $0x13b0] sm:$0xff]
    %v659 = vld [vmem:[#allocation2 + $0x13b8] sm:$0xff]
    %v660 = vld [vmem:[#allocation2 + $0x13c0] sm:$0xff]
    %v661 = vld [vmem:[#allocation2 + $0x13c8] sm:$0xff]
    %v662 = vld [vmem:[#allocation2 + $0x13d0] sm:$0xff]
    %v663 = vld [vmem:[#allocation2 + $0x13d8] sm:$0xff]
    %v664 = vld [vmem:[#allocation2 + $0x13e0] sm:$0xff]
    %v665 = vld [vmem:[#allocation2 + $0x13e8] sm:$0xff]
    %v666 = vld [vmem:[#allocation2 + $0x13f0] sm:$0xff]
    %v667 = vld [vmem:[#allocation2 + $0x13f8] sm:$0xff]
    %v668 = vld [vmem:[#allocation2 + $0x1400] sm:$0xff]
    %v669 = vld [vmem:[#allocation2 + $0x1408] sm:$0xff]
    %v670 = vld [vmem:[#allocation2 + $0x1410] sm:$0xff]
    %v671 = vld [vmem:[#allocation2 + $0x1418] sm:$0xff]
    %v672 = vld [vmem:[#allocation2 + $0x1420] sm:$0xff]
    %v673 = vld [vmem:[#allocation2 + $0x1428] sm:$0xff]
    %v674 = vld [vmem:[#allocation2 + $0x1430] sm:$0xff]
    %v675 = vld [vmem:[#allocation2 + $0x1438] sm:$0xff]
    %v676 = vld [vmem:[#allocation2 + $0x1440] sm:$0xff]
    %v677 = vld [vmem:[#allocation2 + $0x1448] sm:$0xff]
    %v678 = vld [vmem:[#allocation2 + $0x1450] sm:$0xff]
    %v679 = vld [vmem:[#allocation2 + $0x1458] sm:$0xff]
    %v680 = vld [vmem:[#allocation2 + $0x1460] sm:$0xff]
    %v681 = vld [vmem:[#allocation2 + $0x1468] sm:$0xff]
    %v682 = vld [vmem:[#allocation2 + $0x1470] sm:$0xff]
    %v683 = vld [vmem:[#allocation2 + $0x1478] sm:$0xff]
    %v684 = vld [vmem:[#allocation2 + $0x1480] sm:$0xff]
    %v685 = vld [vmem:[#allocation2 + $0x1488] sm:$0xff]
    %v686 = vld [vmem:[#allocation2 + $0x1490] sm:$0xff]
    %v687 = vld [vmem:[#allocation2 + $0x1498] sm:$0xff]
    %v688 = vld [vmem:[#allocation2 + $0x14a0] sm:$0xff]
    %v689 = vld [vmem:[#allocation2 + $0x14a8] sm:$0xff]
    %v690 = vld [vmem:[#allocation2 + $0x14b0] sm:$0xff]
    %v691 = vld [vmem:[#allocation2 + $0x14b8] sm:$0xff]
    %v692 = vld [vmem:[#allocation2 + $0x14c0] sm:$0xff]
    %v693 = vld [vmem:[#allocation2 + $0x14c8] sm:$0xff]
    %v694 = vld [vmem:[#allocation2 + $0x14d0] sm:$0xff]
    %v695 = vld [vmem:[#allocation2 + $0x14d8] sm:$0xff]
    %v696 = vld [vmem:[#allocation2 + $0x14e0] sm:$0xff]
    %v697 = vld [vmem:[#allocation2 + $0x14e8] sm:$0xff]
    %v698 = vld [vmem:[#allocation2 + $0x14f0] sm:$0xff]
    %v699 = vld [vmem:[#allocation2 + $0x14f8] sm:$0xff]
    %v700 = vld [vmem:[#allocation2 + $0x1500] sm:$0xff]
    %v701 = vld [vmem:[#allocation2 + $0x1508] sm:$0xff]
    %v702 = vld [vmem:[#allocation2 + $0x1510] sm:$0xff]
    %v703 = vld [vmem:[#allocation2 + $0x1518] sm:$0xff]
    %v704 = vld [vmem:[#allocation2 + $0x1520] sm:$0xff]
    %v705 = vld [vmem:[#allocation2 + $0x1528] sm:$0xff]
    %v706 = vld [vmem:[#allocation2 + $0x1530] sm:$0xff]
    %v707 = vld [vmem:[#allocation2 + $0x1538] sm:$0xff]
    %v708 = vld [vmem:[#allocation2 + $0x1540] sm:$0xff]
    %v709 = vld [vmem:[#allocation2 + $0x1548] sm:$0xff]
    %v710 = vld [vmem:[#allocation2 + $0x1550] sm:$0xff]
    %v711 = vld [vmem:[#allocation2 + $0x1558] sm:$0xff]
    %v712 = vld [vmem:[#allocation2 + $0x1560] sm:$0xff]
    %v713 = vld [vmem:[#allocation2 + $0x1568] sm:$0xff]
    %v714 = vld [vmem:[#allocation2 + $0x1570] sm:$0xff]
    %v715 = vld [vmem:[#allocation2 + $0x1578] sm:$0xff]
    %v716 = vld [vmem:[#allocation2 + $0x1580] sm:$0xff]
    %v717 = vld [vmem:[#allocation2 + $0x1588] sm:$0xff]
    %v718 = vld [vmem:[#allocation2 + $0x1590] sm:$0xff]
    %v719 = vld [vmem:[#allocation2 + $0x1598] sm:$0xff]
    %v720 = vld [vmem:[#allocation2 + $0x15a0] sm:$0xff]
    %v721 = vld [vmem:[#allocation2 + $0x15a8] sm:$0xff]
    %v722 = vld [vmem:[#allocation2 + $0x15b0] sm:$0xff]
    %v723 = vld [vmem:[#allocation2 + $0x15b8] sm:$0xff]
    %v724 = vld [vmem:[#allocation2 + $0x15c0] sm:$0xff]
    %v725 = vld [vmem:[#allocation2 + $0x15c8] sm:$0xff]
    %v726 = vld [vmem:[#allocation2 + $0x15d0] sm:$0xff]
    %v727 = vld [vmem:[#allocation2 + $0x15d8] sm:$0xff]
    %v728 = vld [vmem:[#allocation2 + $0x15e0] sm:$0xff]
    %v729 = vld [vmem:[#allocation2 + $0x15e8] sm:$0xff]
    %v730 = vld [vmem:[#allocation2 + $0x15f0] sm:$0xff]
    %v731 = vld [vmem:[#allocation2 + $0x15f8] sm:$0xff]
    %v732 = vld [vmem:[#allocation2 + $0x1600] sm:$0xff]
    %v733 = vld [vmem:[#allocation2 + $0x1608] sm:$0xff]
    %v734 = vld [vmem:[#allocation2 + $0x1610] sm:$0xff]
    %v735 = vld [vmem:[#allocation2 + $0x1618] sm:$0xff]
    %v736 = vld [vmem:[#allocation2 + $0x1620] sm:$0xff]
    %v737 = vld [vmem:[#allocation2 + $0x1628] sm:$0xff]
    %v738 = vld [vmem:[#allocation2 + $0x1630] sm:$0xff]
    %v739 = vld [vmem:[#allocation2 + $0x1638] sm:$0xff]
    %v740 = vld [vmem:[#allocation2 + $0x1640] sm:$0xff]
    %v741 = vld [vmem:[#allocation2 + $0x1648] sm:$0xff]
    %v742 = vld [vmem:[#allocation2 + $0x1650] sm:$0xff]
    %v743 = vld [vmem:[#allocation2 + $0x1658] sm:$0xff]
    %v744 = vld [vmem:[#allocation2 + $0x1660] sm:$0xff]
    %v745 = vld [vmem:[#allocation2 + $0x1668] sm:$0xff]
    %v746 = vld [vmem:[#allocation2 + $0x1670] sm:$0xff]
    %v747 = vld [vmem:[#allocation2 + $0x1678] sm:$0xff]
    %v748 = vld [vmem:[#allocation2 + $0x1680] sm:$0xff]
    %v749 = vld [vmem:[#allocation2 + $0x1688] sm:$0xff]
    %v750 = vld [vmem:[#allocation2 + $0x1690] sm:$0xff]
    %v751 = vld [vmem:[#allocation2 + $0x1698] sm:$0xff]
    %v752 = vld [vmem:[#allocation2 + $0x16a0] sm:$0xff]
    %v753 = vld [vmem:[#allocation2 + $0x16a8] sm:$0xff]
    %v754 = vld [vmem:[#allocation2 + $0x16b0] sm:$0xff]
    %v755 = vld [vmem:[#allocation2 + $0x16b8] sm:$0xff]
    %v756 = vld [vmem:[#allocation2 + $0x16c0] sm:$0xff]
    %v757 = vld [vmem:[#allocation2 + $0x16c8] sm:$0xff]
    %v758 = vld [vmem:[#allocation2 + $0x16d0] sm:$0xff]
    %v759 = vld [vmem:[#allocation2 + $0x16d8] sm:$0xff]
    %v760 = vld [vmem:[#allocation2 + $0x16e0] sm:$0xff]
    %v761 = vld [vmem:[#allocation2 + $0x16e8] sm:$0xff]
    %v762 = vld [vmem:[#allocation2 + $0x16f0] sm:$0xff]
    %v763 = vld [vmem:[#allocation2 + $0x16f8] sm:$0xff]
    %v764 = vld [vmem:[#allocation2 + $0x1700] sm:$0xff]
    %v765 = vld [vmem:[#allocation2 + $0x1708] sm:$0xff]
    %v766 = vld [vmem:[#allocation2 + $0x1710] sm:$0xff]
    %v767 = vld [vmem:[#allocation2 + $0x1718] sm:$0xff]
    %v768 = vld [vmem:[#allocation2 + $0x1720] sm:$0xff]
    %v769 = vld [vmem:[#allocation2 + $0x1728] sm:$0xff]
    %v770 = vld [vmem:[#allocation2 + $0x1730] sm:$0xff]
    %v771 = vld [vmem:[#allocation2 + $0x1738] sm:$0xff]
    %v772 = vld [vmem:[#allocation2 + $0x1740] sm:$0xff]
    %v773 = vld [vmem:[#allocation2 + $0x1748] sm:$0xff]
    %v774 = vld [vmem:[#allocation2 + $0x1750] sm:$0xff]
    %v775 = vld [vmem:[#allocation2 + $0x1758] sm:$0xff]
    %v776 = vld [vmem:[#allocation2 + $0x1760] sm:$0xff]
    %v777 = vld [vmem:[#allocation2 + $0x1768] sm:$0xff]
    %v778 = vld [vmem:[#allocation2 + $0x1770] sm:$0xff]
    %v779 = vld [vmem:[#allocation2 + $0x1778] sm:$0xff]
    %v780 = vld [vmem:[#allocation2 + $0x1780] sm:$0xff]
    %v781 = vld [vmem:[#allocation2 + $0x1788] sm:$0xff]
    %v782 = vld [vmem:[#allocation2 + $0x1790] sm:$0xff]
    %v783 = vld [vmem:[#allocation2 + $0x1798] sm:$0xff]
    %v784 = vld [vmem:[#allocation2 + $0x17a0] sm:$0xff]
    %v785 = vld [vmem:[#allocation2 + $0x17a8] sm:$0xff]
    %v786 = vld [vmem:[#allocation2 + $0x17b0] sm:$0xff]
    %v787 = vld [vmem:[#allocation2 + $0x17b8] sm:$0xff]
    %v788 = vld [vmem:[#allocation2 + $0x17c0] sm:$0xff]
    %v789 = vld [vmem:[#allocation2 + $0x17c8] sm:$0xff]
    %v790 = vld [vmem:[#allocation2 + $0x17d0] sm:$0xff]
    %v791 = vld [vmem:[#allocation2 + $0x17d8] sm:$0xff]
    %v792 = vld [vmem:[#allocation2 + $0x17e0] sm:$0xff]
    %v793 = vld [vmem:[#allocation2 + $0x17e8] sm:$0xff]
    %v794 = vld [vmem:[#allocation2 + $0x17f0] sm:$0xff]
    %v795 = vld [vmem:[#allocation2 + $0x17f8] sm:$0xff]
    %v796 = vld [vmem:[#allocation2 + $0x1800] sm:$0xff]
    %v797 = vld [vmem:[#allocation2 + $0x1808] sm:$0xff]
    %v798 = vld [vmem:[#allocation2 + $0x1810] sm:$0xff]
    %v799 = vld [vmem:[#allocation2 + $0x1818] sm:$0xff]
    %v800 = vld [vmem:[#allocation2 + $0x1820] sm:$0xff]
    %v801 = vld [vmem:[#allocation2 + $0x1828] sm:$0xff]
    %v802 = vld [vmem:[#allocation2 + $0x1830] sm:$0xff]
    %v803 = vld [vmem:[#allocation2 + $0x1838] sm:$0xff]
    %v804 = vld [vmem:[#allocation2 + $0x1840] sm:$0xff]
    %v805 = vld [vmem:[#allocation2 + $0x1848] sm:$0xff]
    %v806 = vld [vmem:[#allocation2 + $0x1850] sm:$0xff]
    %v807 = vld [vmem:[#allocation2 + $0x1858] sm:$0xff]
    %v808 = vld [vmem:[#allocation2 + $0x1860] sm:$0xff]
    %v809 = vld [vmem:[#allocation2 + $0x1868] sm:$0xff]
    %v810 = vld [vmem:[#allocation2 + $0x1870] sm:$0xff]
    %v811 = vld [vmem:[#allocation2 + $0x1878] sm:$0xff]
    %v812 = vld [vmem:[#allocation2 + $0x1880] sm:$0xff]
    %v813 = vld [vmem:[#allocation2 + $0x1888] sm:$0xff]
    %v814 = vld [vmem:[#allocation2 + $0x1890] sm:$0xff]
    %v815 = vld [vmem:[#allocation2 + $0x1898] sm:$0xff]
    %v816 = vld [vmem:[#allocation2 + $0x18a0] sm:$0xff]
    %v817 = vld [vmem:[#allocation2 + $0x18a8] sm:$0xff]
    %v818 = vld [vmem:[#allocation2 + $0x18b0] sm:$0xff]
    %v819 = vld [vmem:[#allocation2 + $0x18b8] sm:$0xff]
    %v820 = vld [vmem:[#allocation2 + $0x18c0] sm:$0xff]
    %v821 = vld [vmem:[#allocation2 + $0x18c8] sm:$0xff]
    %v822 = vld [vmem:[#allocation2 + $0x18d0] sm:$0xff]
    %v823 = vld [vmem:[#allocation2 + $0x18d8] sm:$0xff]
    %v824 = vld [vmem:[#allocation2 + $0x18e0] sm:$0xff]
    %v825 = vld [vmem:[#allocation2 + $0x18e8] sm:$0xff]
    %v826 = vld [vmem:[#allocation2 + $0x18f0] sm:$0xff]
    %v827 = vld [vmem:[#allocation2 + $0x18f8] sm:$0xff]
    %v828 = vld [vmem:[#allocation2 + $0x1900] sm:$0xff]
    %v829 = vld [vmem:[#allocation2 + $0x1908] sm:$0xff]
    %v830 = vld [vmem:[#allocation2 + $0x1910] sm:$0xff]
    %v831 = vld [vmem:[#allocation2 + $0x1918] sm:$0xff]
    %v832 = vld [vmem:[#allocation2 + $0x1920] sm:$0xff]
    %v833 = vld [vmem:[#allocation2 + $0x1928] sm:$0xff]
    %v834 = vld [vmem:[#allocation2 + $0x1930] sm:$0xff]
    %v835 = vld [vmem:[#allocation2 + $0x1938] sm:$0xff]
    %v836 = vld [vmem:[#allocation2 + $0x1940] sm:$0xff]
    %v837 = vld [vmem:[#allocation2 + $0x1948] sm:$0xff]
    %v838 = vld [vmem:[#allocation2 + $0x1950] sm:$0xff]
    %v839 = vld [vmem:[#allocation2 + $0x1958] sm:$0xff]
    %v840 = vld [vmem:[#allocation2 + $0x1960] sm:$0xff]
    %v841 = vld [vmem:[#allocation2 + $0x1968] sm:$0xff]
    %v842 = vld [vmem:[#allocation2 + $0x1970] sm:$0xff]
    %v843 = vld [vmem:[#allocation2 + $0x1978] sm:$0xff]
    %v844 = vld [vmem:[#allocation2 + $0x1980] sm:$0xff]
    %v845 = vld [vmem:[#allocation2 + $0x1988] sm:$0xff]
    %v846 = vld [vmem:[#allocation2 + $0x1990] sm:$0xff]
    %v847 = vld [vmem:[#allocation2 + $0x1998] sm:$0xff]
    %v848 = vld [vmem:[#allocation2 + $0x19a0] sm:$0xff]
    %v849 = vld [vmem:[#allocation2 + $0x19a8] sm:$0xff]
    %v850 = vld [vmem:[#allocation2 + $0x19b0] sm:$0xff]
    %v851 = vld [vmem:[#allocation2 + $0x19b8] sm:$0xff]
    %v852 = vld [vmem:[#allocation2 + $0x19c0] sm:$0xff]
    %v853 = vld [vmem:[#allocation2 + $0x19c8] sm:$0xff]
    %v854 = vld [vmem:[#allocation2 + $0x19d0] sm:$0xff]
    %v855 = vld [vmem:[#allocation2 + $0x19d8] sm:$0xff]
    %v856 = vld [vmem:[#allocation2 + $0x19e0] sm:$0xff]
    %v857 = vld [vmem:[#allocation2 + $0x19e8] sm:$0xff]
    %v858 = vld [vmem:[#allocation2 + $0x19f0] sm:$0xff]
    %v859 = vld [vmem:[#allocation2 + $0x19f8] sm:$0xff]
    %v860 = vld [vmem:[#allocation2 + $0x1a00] sm:$0xff]
    %v861 = vld [vmem:[#allocation2 + $0x1a08] sm:$0xff]
    %v862 = vld [vmem:[#allocation2 + $0x1a10] sm:$0xff]
    %v863 = vld [vmem:[#allocation2 + $0x1a18] sm:$0xff]
    %v864 = vld [vmem:[#allocation2 + $0x1a20] sm:$0xff]
    %v865 = vld [vmem:[#allocation2 + $0x1a28] sm:$0xff]
    %v866 = vld [vmem:[#allocation2 + $0x1a30] sm:$0xff]
    %v867 = vld [vmem:[#allocation2 + $0x1a38] sm:$0xff]
    %v868 = vld [vmem:[#allocation2 + $0x1a40] sm:$0xff]
    %v869 = vld [vmem:[#allocation2 + $0x1a48] sm:$0xff]
    %v870 = vld [vmem:[#allocation2 + $0x1a50] sm:$0xff]
    %v871 = vld [vmem:[#allocation2 + $0x1a58] sm:$0xff]
    %v872 = vld [vmem:[#allocation2 + $0x1a60] sm:$0xff]
    %v873 = vld [vmem:[#allocation2 + $0x1a68] sm:$0xff]
    %v874 = vld [vmem:[#allocation2 + $0x1a70] sm:$0xff]
    %v875 = vld [vmem:[#allocation2 + $0x1a78] sm:$0xff]
    %v876 = vld [vmem:[#allocation2 + $0x1a80] sm:$0xff]
    %v877 = vld [vmem:[#allocation2 + $0x1a88] sm:$0xff]
    %v878 = vld [vmem:[#allocation2 + $0x1a90] sm:$0xff]
    %v879 = vld [vmem:[#allocation2 + $0x1a98] sm:$0xff]
    %v880 = vld [vmem:[#allocation2 + $0x1aa0] sm:$0xff]
    %v881 = vld [vmem:[#allocation2 + $0x1aa8] sm:$0xff]
    %v882 = vld [vmem:[#allocation2 + $0x1ab0] sm:$0xff]
    %v883 = vld [vmem:[#allocation2 + $0x1ab8] sm:$0xff]
    %v884 = vld [vmem:[#allocation2 + $0x1ac0] sm:$0xff]
    %v885 = vld [vmem:[#allocation2 + $0x1ac8] sm:$0xff]
    %v886 = vld [vmem:[#allocation2 + $0x1ad0] sm:$0xff]
    %v887 = vld [vmem:[#allocation2 + $0x1ad8] sm:$0xff]
    %v888 = vld [vmem:[#allocation2 + $0x1ae0] sm:$0xff]
    %v889 = vld [vmem:[#allocation2 + $0x1ae8] sm:$0xff]
    %v890 = vld [vmem:[#allocation2 + $0x1af0] sm:$0xff]
    %v891 = vld [vmem:[#allocation2 + $0x1af8] sm:$0xff]
    %892 = vmatprep.subr.mxu0 %v299
    %893 = vmatpush1.msra.mxu0 %v298
    %894 = vmatprep.subr.mxu0 %v281
    %895 = vmatpush1.msra.mxu0 %v280
    %896 = vmatprep.subr.mxu0 %v263
    %897 = vmatpush1.msra.mxu0 %v262
    %898 = vmatprep.subr.mxu0 %v245
    %899 = vmatpush1.msra.mxu0 %v244
    %900 = vmatprep.subr.mxu0 %v227
    %901 = vmatpush1.msra.mxu0 %v226
    %902 = vmatprep.subr.mxu0 %v209
    %903 = vmatpush1.msra.mxu0 %v208
    %904 = vmatprep.subr.mxu0 %v191
    %905 = vmatpush1.msra.mxu0 %v190
    %906 = vmatprep.subr.mxu0 %v173
    %907 = vmatpush1.msra.mxu0 %v172
    %908 = vmatprep.subr.mxu0 %v155
    %909 = vmatpush1.msra.mxu0 %v154
    %910 = vmatprep.subr.mxu0 %v137
    %911 = vmatpush1.msra.mxu0 %v136
    %912 = vmatprep.subr.mxu0 %v119
    %913 = vmatpush1.msra.mxu0 %v118
    %914 = vmatprep.subr.mxu0 %v101
    %915 = vmatpush1.msra.mxu0 %v100
    %916 = vmatprep.subr.mxu0 %v83
    %917 = vmatpush1.msra.mxu0 %v82
    %918 = vmatprep.subr.mxu0 %v65
    %919 = vmatpush1.msra.mxu0 %v64
    %920 = vmatprep.subr.mxu0 %v47
    %921 = vmatpush1.msra.mxu0 %v46
    %922 = vmatprep.subr.mxu0 %v29
    %923 = vmatpush1.msra.mxu0 %v28
    %924 = vmatprep.subr.mxu0 %v587
    %925 = vmatpush2.msra.mxu0 %v586
    %926 = vmatprep.subr.mxu0 %v569
    %927 = vmatpush2.msra.mxu0 %v568
    %928 = vmatprep.subr.mxu0 %v551
    %929 = vmatpush2.msra.mxu0 %v550
    %930 = vmatprep.subr.mxu0 %v533
    %931 = vmatpush2.msra.mxu0 %v532
    %932 = vmatprep.subr.mxu0 %v515
    %933 = vmatpush2.msra.mxu0 %v514
    %934 = vmatprep.subr.mxu0 %v497
    %935 = vmatpush2.msra.mxu0 %v496
    %936 = vmatprep.subr.mxu0 %v479
    %937 = vmatpush2.msra.mxu0 %v478
    %938 = vmatprep.subr.mxu0 %v461
    %939 = vmatpush2.msra.mxu0 %v460
    %940 = vmatprep.subr.mxu0 %v443
    %941 = vmatpush2.msra.mxu0 %v442
    %942 = vmatprep.subr.mxu0 %v425
    %943 = vmatpush2.msra.mxu0 %v424
    %944 = vmatprep.subr.mxu0 %v407
    %945 = vmatpush2.msra.mxu0 %v406
    %946 = vmatprep.subr.mxu0 %v389
    %947 = vmatpush2.msra.mxu0 %v388
    %948 = vmatprep.subr.mxu0 %v371
    %949 = vmatpush2.msra.mxu0 %v370
    %950 = vmatprep.subr.mxu0 %v353
    %951 = vmatpush2.msra.mxu0 %v352
    %952 = vmatprep.subr.mxu0 %v335
    %953 = vmatpush2.msra.mxu0 %v334
    %954 = vmatprep.subr.mxu0 %v317
    %955 = vmatpush2.msra.mxu0 %v316
    %956 = vmatprep.mubr.f32.mxu0 %v26
    %957 = vmatmul.mubr.f32.gmra.mxu0 %v25
    %v958 = vpop.f32.mrf.mxu0
    %v959 = vadd.f32 0.0, %v958
    %v960 = vpop.f32.mrf.mxu0
    %v961 = vadd.f32 0.0, %v960
    %962 = vdwg.mxu0
    %963 = vmatprep.subr.mxu0 %v875
    %964 = vmatpush1.msra.mxu0 %v874
    %965 = vmatprep.subr.mxu0 %v857
    %966 = vmatpush1.msra.mxu0 %v856
    %967 = vmatprep.subr.mxu0 %v839
    %968 = vmatpush1.msra.mxu0 %v838
    %969 = vmatprep.subr.mxu0 %v821
    %970 = vmatpush1.msra.mxu0 %v820
    %971 = vmatprep.subr.mxu0 %v803
    %972 = vmatpush1.msra.mxu0 %v802
    %973 = vmatprep.subr.mxu0 %v785
    %974 = vmatpush1.msra.mxu0 %v784
    %975 = vmatprep.subr.mxu0 %v767
    %976 = vmatpush1.msra.mxu0 %v766
    %977 = vmatprep.subr.mxu0 %v749
    %978 = vmatpush1.msra.mxu0 %v748
    %979 = vmatprep.subr.mxu0 %v731
    %980 = vmatpush1.msra.mxu0 %v730
    %981 = vmatprep.subr.mxu0 %v713
    %982 = vmatpush1.msra.mxu0 %v712
    %983 = vmatprep.subr.mxu0 %v695
    %984 = vmatpush1.msra.mxu0 %v694
    %985 = vmatprep.subr.mxu0 %v677
    %986 = vmatpush1.msra.mxu0 %v676
    %987 = vmatprep.subr.mxu0 %v659
    %988 = vmatpush1.msra.mxu0 %v658
    %989 = vmatprep.subr.mxu0 %v641
    %990 = vmatpush1.msra.mxu0 %v640
    %991 = vmatprep.subr.mxu0 %v623
    %992 = vmatpush1.msra.mxu0 %v622
    %993 = vmatprep.subr.mxu0 %v605
    %994 = vmatpush1.msra.mxu0 %v604
    %995 = vmatprep.subr.mxu0 0.0
    %996 = vmatpush2.msra.mxu0 0.0
    %997 = vmatprep.subr.mxu0 0.0
    %998 = vmatpush2.msra.mxu0 0.0
    %999 = vmatprep.subr.mxu0 0.0
    %1000 = vmatpush2.msra.mxu0 0.0
    %1001 = vmatprep.subr.mxu0 0.0
    %1002 = vmatpush2.msra.mxu0 0.0
    %1003 = vmatprep.subr.mxu0 0.0
    %1004 = vmatpush2.msra.mxu0 0.0
    %1005 = vmatprep.subr.mxu0 0.0
    %1006 = vmatpush2.msra.mxu0 0.0
    %1007 = vmatprep.subr.mxu0 0.0
    %1008 = vmatpush2.msra.mxu0 0.0
    %1009 = vmatprep.subr.mxu0 0.0
    %1010 = vmatpush2.msra.mxu0 0.0
    %1011 = vmatprep.subr.mxu0 0.0
    %1012 = vmatpush2.msra.mxu0 0.0
    %1013 = vmatprep.subr.mxu0 0.0
    %1014 = vmatpush2.msra.mxu0 0.0
    %1015 = vmatprep.subr.mxu0 0.0
    %1016 = vmatpush2.msra.mxu0 0.0
    %1017 = vmatprep.subr.mxu0 0.0
    %1018 = vmatpush2.msra.mxu0 0.0
    %1019 = vmatprep.subr.mxu0 0.0
    %1020 = vmatpush2.msra.mxu0 0.0
    %1021 = vmatprep.subr.mxu0 0.0
    %1022 = vmatpush2.msra.mxu0 0.0
    %1023 = vmatprep.subr.mxu0 0.0
    %1024 = vmatpush2.msra.mxu0 0.0
    %1025 = vmatprep.subr.mxu0 0.0
    %1026 = vmatpush2.msra.mxu0 0.0
    %1027 = vmatprep.mubr.f32.mxu0 0.0
    %1028 = vmatmul.mubr.f32.gmra.mxu0 %v27
    %v1029 = vpop.f32.mrf.mxu0
    %v1030 = vadd.f32 %v959, %v1029
    %v1031 = vpop.f32.mrf.mxu0
    %v1032 = vadd.f32 %v961, %v1031
    %1033 = vdwg.mxu0
    %1034 = vmatprep.subr.mxu0 %v301
    %1035 = vmatpush1.msra.mxu0 %v300
    %1036 = vmatprep.subr.mxu0 %v283
    %1037 = vmatpush1.msra.mxu0 %v282
    %1038 = vmatprep.subr.mxu0 %v265
    %1039 = vmatpush1.msra.mxu0 %v264
    %1040 = vmatprep.subr.mxu0 %v247
    %1041 = vmatpush1.msra.mxu0 %v246
    %1042 = vmatprep.subr.mxu0 %v229
    %1043 = vmatpush1.msra.mxu0 %v228
    %1044 = vmatprep.subr.mxu0 %v211
    %1045 = vmatpush1.msra.mxu0 %v210
    %1046 = vmatprep.subr.mxu0 %v193
    %1047 = vmatpush1.msra.mxu0 %v192
    %1048 = vmatprep.subr.mxu0 %v175
    %1049 = vmatpush1.msra.mxu0 %v174
    %1050 = vmatprep.subr.mxu0 %v157
    %1051 = vmatpush1.msra.mxu0 %v156
    %1052 = vmatprep.subr.mxu0 %v139
    %1053 = vmatpush1.msra.mxu0 %v138
    %1054 = vmatprep.subr.mxu0 %v121
    %1055 = vmatpush1.msra.mxu0 %v120
    %1056 = vmatprep.subr.mxu0 %v103
    %1057 = vmatpush1.msra.mxu0 %v102
    %1058 = vmatprep.subr.mxu0 %v85
    %1059 = vmatpush1.msra.mxu0 %v84
    %1060 = vmatprep.subr.mxu0 %v67
    %1061 = vmatpush1.msra.mxu0 %v66
    %1062 = vmatprep.subr.mxu0 %v49
    %1063 = vmatpush1.msra.mxu0 %v48
    %1064 = vmatprep.subr.mxu0 %v31
    %1065 = vmatpush1.msra.mxu0 %v30
    %1066 = vmatprep.subr.mxu0 %v589
    %1067 = vmatpush2.msra.mxu0 %v588
    %1068 = vmatprep.subr.mxu0 %v571
    %1069 = vmatpush2.msra.mxu0 %v570
    %1070 = vmatprep.subr.mxu0 %v553
    %1071 = vmatpush2.msra.mxu0 %v552
    %1072 = vmatprep.subr.mxu0 %v535
    %1073 = vmatpush2.msra.mxu0 %v534
    %1074 = vmatprep.subr.mxu0 %v517
    %1075 = vmatpush2.msra.mxu0 %v516
    %1076 = vmatprep.subr.mxu0 %v499
    %1077 = vmatpush2.msra.mxu0 %v498
    %1078 = vmatprep.subr.mxu0 %v481
    %1079 = vmatpush2.msra.mxu0 %v480
    %1080 = vmatprep.subr.mxu0 %v463
    %1081 = vmatpush2.msra.mxu0 %v462
    %1082 = vmatprep.subr.mxu0 %v445
    %1083 = vmatpush2.msra.mxu0 %v444
    %1084 = vmatprep.subr.mxu0 %v427
    %1085 = vmatpush2.msra.mxu0 %v426
    %1086 = vmatprep.subr.mxu0 %v409
    %1087 = vmatpush2.msra.mxu0 %v408
    %1088 = vmatprep.subr.mxu0 %v391
    %1089 = vmatpush2.msra.mxu0 %v390
    %1090 = vmatprep.subr.mxu0 %v373
    %1091 = vmatpush2.msra.mxu0 %v372
    %1092 = vmatprep.subr.mxu0 %v355
    %1093 = vmatpush2.msra.mxu0 %v354
    %1094 = vmatprep.subr.mxu0 %v337
    %1095 = vmatpush2.msra.mxu0 %v336
    %1096 = vmatprep.subr.mxu0 %v319
    %1097 = vmatpush2.msra.mxu0 %v318
    %1098 = vmatprep.mubr.f32.mxu0 %v26
    %1099 = vmatmul.mubr.f32.gmra.mxu0 %v25
    %v1100 = vpop.f32.mrf.mxu0
    %v1101 = vadd.f32 0.0, %v1100
    %v1102 = vpop.f32.mrf.mxu0
    %v1103 = vadd.f32 0.0, %v1102
    %1104 = vdwg.mxu0
    %1105 = vmatprep.subr.mxu0 %v877
    %1106 = vmatpush1.msra.mxu0 %v876
    %1107 = vmatprep.subr.mxu0 %v859
    %1108 = vmatpush1.msra.mxu0 %v858
    %1109 = vmatprep.subr.mxu0 %v841
    %1110 = vmatpush1.msra.mxu0 %v840
    %1111 = vmatprep.subr.mxu0 %v823
    %1112 = vmatpush1.msra.mxu0 %v822
    %1113 = vmatprep.subr.mxu0 %v805
    %1114 = vmatpush1.msra.mxu0 %v804
    %1115 = vmatprep.subr.mxu0 %v787
    %1116 = vmatpush1.msra.mxu0 %v786
    %1117 = vmatprep.subr.mxu0 %v769
    %1118 = vmatpush1.msra.mxu0 %v768
    %1119 = vmatprep.subr.mxu0 %v751
    %1120 = vmatpush1.msra.mxu0 %v750
    %1121 = vmatprep.subr.mxu0 %v733
    %1122 = vmatpush1.msra.mxu0 %v732
    %1123 = vmatprep.subr.mxu0 %v715
    %1124 = vmatpush1.msra.mxu0 %v714
    %1125 = vmatprep.subr.mxu0 %v697
    %1126 = vmatpush1.msra.mxu0 %v696
    %1127 = vmatprep.subr.mxu0 %v679
    %1128 = vmatpush1.msra.mxu0 %v678
    %1129 = vmatprep.subr.mxu0 %v661
    %1130 = vmatpush1.msra.mxu0 %v660
    %1131 = vmatprep.subr.mxu0 %v643
    %1132 = vmatpush1.msra.mxu0 %v642
    %1133 = vmatprep.subr.mxu0 %v625
    %1134 = vmatpush1.msra.mxu0 %v624
    %1135 = vmatprep.subr.mxu0 %v607
    %1136 = vmatpush1.msra.mxu0 %v606
    %1137 = vmatprep.subr.mxu0 0.0
    %1138 = vmatpush2.msra.mxu0 0.0
    %1139 = vmatprep.subr.mxu0 0.0
    %1140 = vmatpush2.msra.mxu0 0.0
    %1141 = vmatprep.subr.mxu0 0.0
    %1142 = vmatpush2.msra.mxu0 0.0
    %1143 = vmatprep.subr.mxu0 0.0
    %1144 = vmatpush2.msra.mxu0 0.0
    %1145 = vmatprep.subr.mxu0 0.0
    %1146 = vmatpush2.msra.mxu0 0.0
    %1147 = vmatprep.subr.mxu0 0.0
    %1148 = vmatpush2.msra.mxu0 0.0
    %1149 = vmatprep.subr.mxu0 0.0
    %1150 = vmatpush2.msra.mxu0 0.0
    %1151 = vmatprep.subr.mxu0 0.0
    %1152 = vmatpush2.msra.mxu0 0.0
    %1153 = vmatprep.subr.mxu0 0.0
    %1154 = vmatpush2.msra.mxu0 0.0
    %1155 = vmatprep.subr.mxu0 0.0
    %1156 = vmatpush2.msra.mxu0 0.0
    %1157 = vmatprep.subr.mxu0 0.0
    %1158 = vmatpush2.msra.mxu0 0.0
    %1159 = vmatprep.subr.mxu0 0.0
    %1160 = vmatpush2.msra.mxu0 0.0
    %1161 = vmatprep.subr.mxu0 0.0
    %1162 = vmatpush2.msra.mxu0 0.0
    %1163 = vmatprep.subr.mxu0 0.0
    %1164 = vmatpush2.msra.mxu0 0.0
    %1165 = vmatprep.subr.mxu0 0.0
    %1166 = vmatpush2.msra.mxu0 0.0
    %1167 = vmatprep.subr.mxu0 0.0
    %1168 = vmatpush2.msra.mxu0 0.0
    %1169 = vmatprep.mubr.f32.mxu0 0.0
    %1170 = vmatmul.mubr.f32.gmra.mxu0 %v27
    %v1171 = vpop.f32.mrf.mxu0
    %v1172 = vadd.f32 %v1101, %v1171
    %v1173 = vpop.f32.mrf.mxu0
    %v1174 = vadd.f32 %v1103, %v1173
    %1175 = vdwg.mxu0
    %1176 = vmatprep.subr.mxu0 %v303
    %1177 = vmatpush1.msra.mxu0 %v302
    %1178 = vmatprep.subr.mxu0 %v285
    %1179 = vmatpush1.msra.mxu0 %v284
    %1180 = vmatprep.subr.mxu0 %v267
    %1181 = vmatpush1.msra.mxu0 %v266
    %1182 = vmatprep.subr.mxu0 %v249
    %1183 = vmatpush1.msra.mxu0 %v248
    %1184 = vmatprep.subr.mxu0 %v231
    %1185 = vmatpush1.msra.mxu0 %v230
    %1186 = vmatprep.subr.mxu0 %v213
    %1187 = vmatpush1.msra.mxu0 %v212
    %1188 = vmatprep.subr.mxu0 %v195
    %1189 = vmatpush1.msra.mxu0 %v194
    %1190 = vmatprep.subr.mxu0 %v177
    %1191 = vmatpush1.msra.mxu0 %v176
    %1192 = vmatprep.subr.mxu0 %v159
    %1193 = vmatpush1.msra.mxu0 %v158
    %1194 = vmatprep.subr.mxu0 %v141
    %1195 = vmatpush1.msra.mxu0 %v140
    %1196 = vmatprep.subr.mxu0 %v123
    %1197 = vmatpush1.msra.mxu0 %v122
    %1198 = vmatprep.subr.mxu0 %v105
    %1199 = vmatpush1.msra.mxu0 %v104
    %1200 = vmatprep.subr.mxu0 %v87
    %1201 = vmatpush1.msra.mxu0 %v86
    %1202 = vmatprep.subr.mxu0 %v69
    %1203 = vmatpush1.msra.mxu0 %v68
    %1204 = vmatprep.subr.mxu0 %v51
    %1205 = vmatpush1.msra.mxu0 %v50
    %1206 = vmatprep.subr.mxu0 %v33
    %1207 = vmatpush1.msra.mxu0 %v32
    %1208 = vmatprep.subr.mxu0 %v591
    %1209 = vmatpush2.msra.mxu0 %v590
    %1210 = vmatprep.subr.mxu0 %v573
    %1211 = vmatpush2.msra.mxu0 %v572
    %1212 = vmatprep.subr.mxu0 %v555
    %1213 = vmatpush2.msra.mxu0 %v554
    %1214 = vmatprep.subr.mxu0 %v537
    %1215 = vmatpush2.msra.mxu0 %v536
    %1216 = vmatprep.subr.mxu0 %v519
    %1217 = vmatpush2.msra.mxu0 %v518
    %1218 = vmatprep.subr.mxu0 %v501
    %1219 = vmatpush2.msra.mxu0 %v500
    %1220 = vmatprep.subr.mxu0 %v483
    %1221 = vmatpush2.msra.mxu0 %v482
    %1222 = vmatprep.subr.mxu0 %v465
    %1223 = vmatpush2.msra.mxu0 %v464
    %1224 = vmatprep.subr.mxu0 %v447
    %1225 = vmatpush2.msra.mxu0 %v446
    %1226 = vmatprep.subr.mxu0 %v429
    %1227 = vmatpush2.msra.mxu0 %v428
    %1228 = vmatprep.subr.mxu0 %v411
    %1229 = vmatpush2.msra.mxu0 %v410
    %1230 = vmatprep.subr.mxu0 %v393
    %1231 = vmatpush2.msra.mxu0 %v392
    %1232 = vmatprep.subr.mxu0 %v375
    %1233 = vmatpush2.msra.mxu0 %v374
    %1234 = vmatprep.subr.mxu0 %v357
    %1235 = vmatpush2.msra.mxu0 %v356
    %1236 = vmatprep.subr.mxu0 %v339
    %1237 = vmatpush2.msra.mxu0 %v338
    %1238 = vmatprep.subr.mxu0 %v321
    %1239 = vmatpush2.msra.mxu0 %v320
    %1240 = vmatprep.mubr.f32.mxu0 %v26
    %1241 = vmatmul.mubr.f32.gmra.mxu0 %v25
    %v1242 = vpop.f32.mrf.mxu0
    %v1243 = vadd.f32 0.0, %v1242
    %v1244 = vpop.f32.mrf.mxu0
    %v1245 = vadd.f32 0.0, %v1244
    %1246 = vdwg.mxu0
    %1247 = vmatprep.subr.mxu0 %v879
    %1248 = vmatpush1.msra.mxu0 %v878
    %1249 = vmatprep.subr.mxu0 %v861
    %1250 = vmatpush1.msra.mxu0 %v860
    %1251 = vmatprep.subr.mxu0 %v843
    %1252 = vmatpush1.msra.mxu0 %v842
    %1253 = vmatprep.subr.mxu0 %v825
    %1254 = vmatpush1.msra.mxu0 %v824
    %1255 = vmatprep.subr.mxu0 %v807
    %1256 = vmatpush1.msra.mxu0 %v806
    %1257 = vmatprep.subr.mxu0 %v789
    %1258 = vmatpush1.msra.mxu0 %v788
    %1259 = vmatprep.subr.mxu0 %v771
    %1260 = vmatpush1.msra.mxu0 %v770
    %1261 = vmatprep.subr.mxu0 %v753
    %1262 = vmatpush1.msra.mxu0 %v752
    %1263 = vmatprep.subr.mxu0 %v735
    %1264 = vmatpush1.msra.mxu0 %v734
    %1265 = vmatprep.subr.mxu0 %v717
    %1266 = vmatpush1.msra.mxu0 %v716
    %1267 = vmatprep.subr.mxu0 %v699
    %1268 = vmatpush1.msra.mxu0 %v698
    %1269 = vmatprep.subr.mxu0 %v681
    %1270 = vmatpush1.msra.mxu0 %v680
    %1271 = vmatprep.subr.mxu0 %v663
    %1272 = vmatpush1.msra.mxu0 %v662
    %1273 = vmatprep.subr.mxu0 %v645
    %1274 = vmatpush1.msra.mxu0 %v644
    %1275 = vmatprep.subr.mxu0 %v627
    %1276 = vmatpush1.msra.mxu0 %v626
    %1277 = vmatprep.subr.mxu0 %v609
    %1278 = vmatpush1.msra.mxu0 %v608
    %1279 = vmatprep.subr.mxu0 0.0
    %1280 = vmatpush2.msra.mxu0 0.0
    %1281 = vmatprep.subr.mxu0 0.0
    %1282 = vmatpush2.msra.mxu0 0.0
    %1283 = vmatprep.subr.mxu0 0.0
    %1284 = vmatpush2.msra.mxu0 0.0
    %1285 = vmatprep.subr.mxu0 0.0
    %1286 = vmatpush2.msra.mxu0 0.0
    %1287 = vmatprep.subr.mxu0 0.0
    %1288 = vmatpush2.msra.mxu0 0.0
    %1289 = vmatprep.subr.mxu0 0.0
    %1290 = vmatpush2.msra.mxu0 0.0
    %1291 = vmatprep.subr.mxu0 0.0
    %1292 = vmatpush2.msra.mxu0 0.0
    %1293 = vmatprep.subr.mxu0 0.0
    %1294 = vmatpush2.msra.mxu0 0.0
    %1295 = vmatprep.subr.mxu0 0.0
    %1296 = vmatpush2.msra.mxu0 0.0
    %1297 = vmatprep.subr.mxu0 0.0
    %1298 = vmatpush2.msra.mxu0 0.0
    %1299 = vmatprep.subr.mxu0 0.0
    %1300 = vmatpush2.msra.mxu0 0.0
    %1301 = vmatprep.subr.mxu0 0.0
    %1302 = vmatpush2.msra.mxu0 0.0
    %1303 = vmatprep.subr.mxu0 0.0
    %1304 = vmatpush2.msra.mxu0 0.0
    %1305 = vmatprep.subr.mxu0 0.0
    %1306 = vmatpush2.msra.mxu0 0.0
    %1307 = vmatprep.subr.mxu0 0.0
    %1308 = vmatpush2.msra.mxu0 0.0
    %1309 = vmatprep.subr.mxu0 0.0
    %1310 = vmatpush2.msra.mxu0 0.0
    %1311 = vmatprep.mubr.f32.mxu0 0.0
    %1312 = vmatmul.mubr.f32.gmra.mxu0 %v27
    %v1313 = vpop.f32.mrf.mxu0
    %v1314 = vadd.f32 %v1243, %v1313
    %v1315 = vpop.f32.mrf.mxu0
    %v1316 = vadd.f32 %v1245, %v1315
    %1317 = vdwg.mxu0
    %1318 = vmatprep.subr.mxu0 %v305
    %1319 = vmatpush1.msra.mxu0 %v304
    %1320 = vmatprep.subr.mxu0 %v287
    %1321 = vmatpush1.msra.mxu0 %v286
    %1322 = vmatprep.subr.mxu0 %v269
    %1323 = vmatpush1.msra.mxu0 %v268
    %1324 = vmatprep.subr.mxu0 %v251
    %1325 = vmatpush1.msra.mxu0 %v250
    %1326 = vmatprep.subr.mxu0 %v233
    %1327 = vmatpush1.msra.mxu0 %v232
    %1328 = vmatprep.subr.mxu0 %v215
    %1329 = vmatpush1.msra.mxu0 %v214
    %1330 = vmatprep.subr.mxu0 %v197
    %1331 = vmatpush1.msra.mxu0 %v196
    %1332 = vmatprep.subr.mxu0 %v179
    %1333 = vmatpush1.msra.mxu0 %v178
    %1334 = vmatprep.subr.mxu0 %v161
    %1335 = vmatpush1.msra.mxu0 %v160
    %1336 = vmatprep.subr.mxu0 %v143
    %1337 = vmatpush1.msra.mxu0 %v142
    %1338 = vmatprep.subr.mxu0 %v125
    %1339 = vmatpush1.msra.mxu0 %v124
    %1340 = vmatprep.subr.mxu0 %v107
    %1341 = vmatpush1.msra.mxu0 %v106
    %1342 = vmatprep.subr.mxu0 %v89
    %1343 = vmatpush1.msra.mxu0 %v88
    %1344 = vmatprep.subr.mxu0 %v71
    %1345 = vmatpush1.msra.mxu0 %v70
    %1346 = vmatprep.subr.mxu0 %v53
    %1347 = vmatpush1.msra.mxu0 %v52
    %1348 = vmatprep.subr.mxu0 %v35
    %1349 = vmatpush1.msra.mxu0 %v34
    %1350 = vmatprep.subr.mxu0 %v593
    %1351 = vmatpush2.msra.mxu0 %v592
    %1352 = vmatprep.subr.mxu0 %v575
    %1353 = vmatpush2.msra.mxu0 %v574
    %1354 = vmatprep.subr.mxu0 %v557
    %1355 = vmatpush2.msra.mxu0 %v556
    %1356 = vmatprep.subr.mxu0 %v539
    %1357 = vmatpush2.msra.mxu0 %v538
    %1358 = vmatprep.subr.mxu0 %v521
    %1359 = vmatpush2.msra.mxu0 %v520
    %1360 = vmatprep.subr.mxu0 %v503
    %1361 = vmatpush2.msra.mxu0 %v502
    %1362 = vmatprep.subr.mxu0 %v485
    %1363 = vmatpush2.msra.mxu0 %v484
    %1364 = vmatprep.subr.mxu0 %v467
    %1365 = vmatpush2.msra.mxu0 %v466
    %1366 = vmatprep.subr.mxu0 %v449
    %1367 = vmatpush2.msra.mxu0 %v448
    %1368 = vmatprep.subr.mxu0 %v431
    %1369 = vmatpush2.msra.mxu0 %v430
    %1370 = vmatprep.subr.mxu0 %v413
    %1371 = vmatpush2.msra.mxu0 %v412
    %1372 = vmatprep.subr.mxu0 %v395
    %1373 = vmatpush2.msra.mxu0 %v394
    %1374 = vmatprep.subr.mxu0 %v377
    %1375 = vmatpush2.msra.mxu0 %v376
    %1376 = vmatprep.subr.mxu0 %v359
    %1377 = vmatpush2.msra.mxu0 %v358
    %1378 = vmatprep.subr.mxu0 %v341
    %1379 = vmatpush2.msra.mxu0 %v340
    %1380 = vmatprep.subr.mxu0 %v323
    %1381 = vmatpush2.msra.mxu0 %v322
    %1382 = vmatprep.mubr.f32.mxu0 %v26
    %1383 = vmatmul.mubr.f32.gmra.mxu0 %v25
    %v1384 = vpop.f32.mrf.mxu0
    %v1385 = vadd.f32 0.0, %v1384
    %v1386 = vpop.f32.mrf.mxu0
    %v1387 = vadd.f32 0.0, %v1386
    %1388 = vdwg.mxu0
    %1389 = vmatprep.subr.mxu0 %v881
    %1390 = vmatpush1.msra.mxu0 %v880
    %1391 = vmatprep.subr.mxu0 %v863
    %1392 = vmatpush1.msra.mxu0 %v862
    %1393 = vmatprep.subr.mxu0 %v845
    %1394 = vmatpush1.msra.mxu0 %v844
    %1395 = vmatprep.subr.mxu0 %v827
    %1396 = vmatpush1.msra.mxu0 %v826
    %1397 = vmatprep.subr.mxu0 %v809
    %1398 = vmatpush1.msra.mxu0 %v808
    %1399 = vmatprep.subr.mxu0 %v791
    %1400 = vmatpush1.msra.mxu0 %v790
    %1401 = vmatprep.subr.mxu0 %v773
    %1402 = vmatpush1.msra.mxu0 %v772
    %1403 = vmatprep.subr.mxu0 %v755
    %1404 = vmatpush1.msra.mxu0 %v754
    %1405 = vmatprep.subr.mxu0 %v737
    %1406 = vmatpush1.msra.mxu0 %v736
    %1407 = vmatprep.subr.mxu0 %v719
    %1408 = vmatpush1.msra.mxu0 %v718
    %1409 = vmatprep.subr.mxu0 %v701
    %1410 = vmatpush1.msra.mxu0 %v700
    %1411 = vmatprep.subr.mxu0 %v683
    %1412 = vmatpush1.msra.mxu0 %v682
    %1413 = vmatprep.subr.mxu0 %v665
    %1414 = vmatpush1.msra.mxu0 %v664
    %1415 = vmatprep.subr.mxu0 %v647
    %1416 = vmatpush1.msra.mxu0 %v646
    %1417 = vmatprep.subr.mxu0 %v629
    %1418 = vmatpush1.msra.mxu0 %v628
    %1419 = vmatprep.subr.mxu0 %v611
    %1420 = vmatpush1.msra.mxu0 %v610
    %1421 = vmatprep.subr.mxu0 0.0
    %1422 = vmatpush2.msra.mxu0 0.0
    %1423 = vmatprep.subr.mxu0 0.0
    %1424 = vmatpush2.msra.mxu0 0.0
    %1425 = vmatprep.subr.mxu0 0.0
    %1426 = vmatpush2.msra.mxu0 0.0
    %1427 = vmatprep.subr.mxu0 0.0
    %1428 = vmatpush2.msra.mxu0 0.0
    %1429 = vmatprep.subr.mxu0 0.0
    %1430 = vmatpush2.msra.mxu0 0.0
    %1431 = vmatprep.subr.mxu0 0.0
    %1432 = vmatpush2.msra.mxu0 0.0
    %1433 = vmatprep.subr.mxu0 0.0
    %1434 = vmatpush2.msra.mxu0 0.0
    %1435 = vmatprep.subr.mxu0 0.0
    %1436 = vmatpush2.msra.mxu0 0.0
    %1437 = vmatprep.subr.mxu0 0.0
    %1438 = vmatpush2.msra.mxu0 0.0
    %1439 = vmatprep.subr.mxu0 0.0
    %1440 = vmatpush2.msra.mxu0 0.0
    %1441 = vmatprep.subr.mxu0 0.0
    %1442 = vmatpush2.msra.mxu0 0.0
    %1443 = vmatprep.subr.mxu0 0.0
    %1444 = vmatpush2.msra.mxu0 0.0
    %1445 = vmatprep.subr.mxu0 0.0
    %1446 = vmatpush2.msra.mxu0 0.0
    %1447 = vmatprep.subr.mxu0 0.0
    %1448 = vmatpush2.msra.mxu0 0.0
    %1449 = vmatprep.subr.mxu0 0.0
    %1450 = vmatpush2.msra.mxu0 0.0
    %1451 = vmatprep.subr.mxu0 0.0
    %1452 = vmatpush2.msra.mxu0 0.0
    %1453 = vmatprep.mubr.f32.mxu0 0.0
    %1454 = vmatmul.mubr.f32.gmra.mxu0 %v27
    %v1455 = vpop.f32.mrf.mxu0
    %v1456 = vadd.f32 %v1385, %v1455
    %v1457 = vpop.f32.mrf.mxu0
    %v1458 = vadd.f32 %v1387, %v1457
    %1459 = vdwg.mxu0
    %1460 = vmatprep.subr.mxu0 %v307
    %1461 = vmatpush1.msra.mxu0 %v306
    %1462 = vmatprep.subr.mxu0 %v289
    %1463 = vmatpush1.msra.mxu0 %v288
    %1464 = vmatprep.subr.mxu0 %v271
    %1465 = vmatpush1.msra.mxu0 %v270
    %1466 = vmatprep.subr.mxu0 %v253
    %1467 = vmatpush1.msra.mxu0 %v252
    %1468 = vmatprep.subr.mxu0 %v235
    %1469 = vmatpush1.msra.mxu0 %v234
    %1470 = vmatprep.subr.mxu0 %v217
    %1471 = vmatpush1.msra.mxu0 %v216
    %1472 = vmatprep.subr.mxu0 %v199
    %1473 = vmatpush1.msra.mxu0 %v198
    %1474 = vmatprep.subr.mxu0 %v181
    %1475 = vmatpush1.msra.mxu0 %v180
    %1476 = vmatprep.subr.mxu0 %v163
    %1477 = vmatpush1.msra.mxu0 %v162
    %1478 = vmatprep.subr.mxu0 %v145
    %1479 = vmatpush1.msra.mxu0 %v144
    %1480 = vmatprep.subr.mxu0 %v127
    %1481 = vmatpush1.msra.mxu0 %v126
    %1482 = vmatprep.subr.mxu0 %v109
    %1483 = vmatpush1.msra.mxu0 %v108
    %1484 = vmatprep.subr.mxu0 %v91
    %1485 = vmatpush1.msra.mxu0 %v90
    %1486 = vmatprep.subr.mxu0 %v73
    %1487 = vmatpush1.msra.mxu0 %v72
    %1488 = vmatprep.subr.mxu0 %v55
    %1489 = vmatpush1.msra.mxu0 %v54
    %1490 = vmatprep.subr.mxu0 %v37
    %1491 = vmatpush1.msra.mxu0 %v36
    %1492 = vmatprep.subr.mxu0 %v595
    %1493 = vmatpush2.msra.mxu0 %v594
    %1494 = vmatprep.subr.mxu0 %v577
    %1495 = vmatpush2.msra.mxu0 %v576
    %1496 = vmatprep.subr.mxu0 %v559
    %1497 = vmatpush2.msra.mxu0 %v558
    %1498 = vmatprep.subr.mxu0 %v541
    %1499 = vmatpush2.msra.mxu0 %v540
    %1500 = vmatprep.subr.mxu0 %v523
    %1501 = vmatpush2.msra.mxu0 %v522
    %1502 = vmatprep.subr.mxu0 %v505
    %1503 = vmatpush2.msra.mxu0 %v504
    %1504 = vmatprep.subr.mxu0 %v487
    %1505 = vmatpush2.msra.mxu0 %v486
    %1506 = vmatprep.subr.mxu0 %v469
    %1507 = vmatpush2.msra.mxu0 %v468
    %1508 = vmatprep.subr.mxu0 %v451
    %1509 = vmatpush2.msra.mxu0 %v450
    %1510 = vmatprep.subr.mxu0 %v433
    %1511 = vmatpush2.msra.mxu0 %v432
    %1512 = vmatprep.subr.mxu0 %v415
    %1513 = vmatpush2.msra.mxu0 %v414
    %1514 = vmatprep.subr.mxu0 %v397
    %1515 = vmatpush2.msra.mxu0 %v396
    %1516 = vmatprep.subr.mxu0 %v379
    %1517 = vmatpush2.msra.mxu0 %v378
    %1518 = vmatprep.subr.mxu0 %v361
    %1519 = vmatpush2.msra.mxu0 %v360
    %1520 = vmatprep.subr.mxu0 %v343
    %1521 = vmatpush2.msra.mxu0 %v342
    %1522 = vmatprep.subr.mxu0 %v325
    %1523 = vmatpush2.msra.mxu0 %v324
    %1524 = vmatprep.mubr.f32.mxu0 %v26
    %1525 = vmatmul.mubr.f32.gmra.mxu0 %v25
    %v1526 = vpop.f32.mrf.mxu0
    %v1527 = vadd.f32 0.0, %v1526
    %v1528 = vpop.f32.mrf.mxu0
    %v1529 = vadd.f32 0.0, %v1528
    %1530 = vdwg.mxu0
    %1531 = vmatprep.subr.mxu0 %v883
    %1532 = vmatpush1.msra.mxu0 %v882
    %1533 = vmatprep.subr.mxu0 %v865
    %1534 = vmatpush1.msra.mxu0 %v864
    %1535 = vmatprep.subr.mxu0 %v847
    %1536 = vmatpush1.msra.mxu0 %v846
    %1537 = vmatprep.subr.mxu0 %v829
    %1538 = vmatpush1.msra.mxu0 %v828
    %1539 = vmatprep.subr.mxu0 %v811
    %1540 = vmatpush1.msra.mxu0 %v810
    %1541 = vmatprep.subr.mxu0 %v793
    %1542 = vmatpush1.msra.mxu0 %v792
    %1543 = vmatprep.subr.mxu0 %v775
    %1544 = vmatpush1.msra.mxu0 %v774
    %1545 = vmatprep.subr.mxu0 %v757
    %1546 = vmatpush1.msra.mxu0 %v756
    %1547 = vmatprep.subr.mxu0 %v739
    %1548 = vmatpush1.msra.mxu0 %v738
    %1549 = vmatprep.subr.mxu0 %v721
    %1550 = vmatpush1.msra.mxu0 %v720
    %1551 = vmatprep.subr.mxu0 %v703
    %1552 = vmatpush1.msra.mxu0 %v702
    %1553 = vmatprep.subr.mxu0 %v685
    %1554 = vmatpush1.msra.mxu0 %v684
    %1555 = vmatprep.subr.mxu0 %v667
    %1556 = vmatpush1.msra.mxu0 %v666
    %1557 = vmatprep.subr.mxu0 %v649
    %1558 = vmatpush1.msra.mxu0 %v648
    %1559 = vmatprep.subr.mxu0 %v631
    %1560 = vmatpush1.msra.mxu0 %v630
    %1561 = vmatprep.subr.mxu0 %v613
    %1562 = vmatpush1.msra.mxu0 %v612
    %1563 = vmatprep.subr.mxu0 0.0
    %1564 = vmatpush2.msra.mxu0 0.0
    %1565 = vmatprep.subr.mxu0 0.0
    %1566 = vmatpush2.msra.mxu0 0.0
    %1567 = vmatprep.subr.mxu0 0.0
    %1568 = vmatpush2.msra.mxu0 0.0
    %1569 = vmatprep.subr.mxu0 0.0
    %1570 = vmatpush2.msra.mxu0 0.0
    %1571 = vmatprep.subr.mxu0 0.0
    %1572 = vmatpush2.msra.mxu0 0.0
    %1573 = vmatprep.subr.mxu0 0.0
    %1574 = vmatpush2.msra.mxu0 0.0
    %1575 = vmatprep.subr.mxu0 0.0
    %1576 = vmatpush2.msra.mxu0 0.0
    %1577 = vmatprep.subr.mxu0 0.0
    %1578 = vmatpush2.msra.mxu0 0.0
    %1579 = vmatprep.subr.mxu0 0.0
    %1580 = vmatpush2.msra.mxu0 0.0
    %1581 = vmatprep.subr.mxu0 0.0
    %1582 = vmatpush2.msra.mxu0 0.0
    %1583 = vmatprep.subr.mxu0 0.0
    %1584 = vmatpush2.msra.mxu0 0.0
    %1585 = vmatprep.subr.mxu0 0.0
    %1586 = vmatpush2.msra.mxu0 0.0
    %1587 = vmatprep.subr.mxu0 0.0
    %1588 = vmatpush2.msra.mxu0 0.0
    %1589 = vmatprep.subr.mxu0 0.0
    %1590 = vmatpush2.msra.mxu0 0.0
    %1591 = vmatprep.subr.mxu0 0.0
    %1592 = vmatpush2.msra.mxu0 0.0
    %1593 = vmatprep.subr.mxu0 0.0
    %1594 = vmatpush2.msra.mxu0 0.0
    %1595 = vmatprep.mubr.f32.mxu0 0.0
    %1596 = vmatmul.mubr.f32.gmra.mxu0 %v27
    %v1597 = vpop.f32.mrf.mxu0
    %v1598 = vadd.f32 %v1527, %v1597
    %v1599 = vpop.f32.mrf.mxu0
    %v1600 = vadd.f32 %v1529, %v1599
    %1601 = vdwg.mxu0
    %1602 = vmatprep.subr.mxu0 %v309
    %1603 = vmatpush1.msra.mxu0 %v308
    %1604 = vmatprep.subr.mxu0 %v291
    %1605 = vmatpush1.msra.mxu0 %v290
    %1606 = vmatprep.subr.mxu0 %v273
    %1607 = vmatpush1.msra.mxu0 %v272
    %1608 = vmatprep.subr.mxu0 %v255
    %1609 = vmatpush1.msra.mxu0 %v254
    %1610 = vmatprep.subr.mxu0 %v237
    %1611 = vmatpush1.msra.mxu0 %v236
    %1612 = vmatprep.subr.mxu0 %v219
    %1613 = vmatpush1.msra.mxu0 %v218
    %1614 = vmatprep.subr.mxu0 %v201
    %1615 = vmatpush1.msra.mxu0 %v200
    %1616 = vmatprep.subr.mxu0 %v183
    %1617 = vmatpush1.msra.mxu0 %v182
    %1618 = vmatprep.subr.mxu0 %v165
    %1619 = vmatpush1.msra.mxu0 %v164
    %1620 = vmatprep.subr.mxu0 %v147
    %1621 = vmatpush1.msra.mxu0 %v146
    %1622 = vmatprep.subr.mxu0 %v129
    %1623 = vmatpush1.msra.mxu0 %v128
    %1624 = vmatprep.subr.mxu0 %v111
    %1625 = vmatpush1.msra.mxu0 %v110
    %1626 = vmatprep.subr.mxu0 %v93
    %1627 = vmatpush1.msra.mxu0 %v92
    %1628 = vmatprep.subr.mxu0 %v75
    %1629 = vmatpush1.msra.mxu0 %v74
    %1630 = vmatprep.subr.mxu0 %v57
    %1631 = vmatpush1.msra.mxu0 %v56
    %1632 = vmatprep.subr.mxu0 %v39
    %1633 = vmatpush1.msra.mxu0 %v38
    %1634 = vmatprep.subr.mxu0 %v597
    %1635 = vmatpush2.msra.mxu0 %v596
    %1636 = vmatprep.subr.mxu0 %v579
    %1637 = vmatpush2.msra.mxu0 %v578
    %1638 = vmatprep.subr.mxu0 %v561
    %1639 = vmatpush2.msra.mxu0 %v560
    %1640 = vmatprep.subr.mxu0 %v543
    %1641 = vmatpush2.msra.mxu0 %v542
    %1642 = vmatprep.subr.mxu0 %v525
    %1643 = vmatpush2.msra.mxu0 %v524
    %1644 = vmatprep.subr.mxu0 %v507
    %1645 = vmatpush2.msra.mxu0 %v506
    %1646 = vmatprep.subr.mxu0 %v489
    %1647 = vmatpush2.msra.mxu0 %v488
    %1648 = vmatprep.subr.mxu0 %v471
    %1649 = vmatpush2.msra.mxu0 %v470
    %1650 = vmatprep.subr.mxu0 %v453
    %1651 = vmatpush2.msra.mxu0 %v452
    %1652 = vmatprep.subr.mxu0 %v435
    %1653 = vmatpush2.msra.mxu0 %v434
    %1654 = vmatprep.subr.mxu0 %v417
    %1655 = vmatpush2.msra.mxu0 %v416
    %1656 = vmatprep.subr.mxu0 %v399
    %1657 = vmatpush2.msra.mxu0 %v398
    %1658 = vmatprep.subr.mxu0 %v381
    %1659 = vmatpush2.msra.mxu0 %v380
    %1660 = vmatprep.subr.mxu0 %v363
    %1661 = vmatpush2.msra.mxu0 %v362
    %1662 = vmatprep.subr.mxu0 %v345
    %1663 = vmatpush2.msra.mxu0 %v344
    %1664 = vmatprep.subr.mxu0 %v327
    %1665 = vmatpush2.msra.mxu0 %v326
    %1666 = vmatprep.mubr.f32.mxu0 %v26
    %1667 = vmatmul.mubr.f32.gmra.mxu0 %v25
    %v1668 = vpop.f32.mrf.mxu0
    %v1669 = vadd.f32 0.0, %v1668
    %v1670 = vpop.f32.mrf.mxu0
    %v1671 = vadd.f32 0.0, %v1670
    %1672 = vdwg.mxu0
    %1673 = vmatprep.subr.mxu0 %v885
    %1674 = vmatpush1.msra.mxu0 %v884
    %1675 = vmatprep.subr.mxu0 %v867
    %1676 = vmatpush1.msra.mxu0 %v866
    %1677 = vmatprep.subr.mxu0 %v849
    %1678 = vmatpush1.msra.mxu0 %v848
    %1679 = vmatprep.subr.mxu0 %v831
    %1680 = vmatpush1.msra.mxu0 %v830
    %1681 = vmatprep.subr.mxu0 %v813
    %1682 = vmatpush1.msra.mxu0 %v812
    %1683 = vmatprep.subr.mxu0 %v795
    %1684 = vmatpush1.msra.mxu0 %v794
    %1685 = vmatprep.subr.mxu0 %v777
    %1686 = vmatpush1.msra.mxu0 %v776
    %1687 = vmatprep.subr.mxu0 %v759
    %1688 = vmatpush1.msra.mxu0 %v758
    %1689 = vmatprep.subr.mxu0 %v741
    %1690 = vmatpush1.msra.mxu0 %v740
    %1691 = vmatprep.subr.mxu0 %v723
    %1692 = vmatpush1.msra.mxu0 %v722
    %1693 = vmatprep.subr.mxu0 %v705
    %1694 = vmatpush1.msra.mxu0 %v704
    %1695 = vmatprep.subr.mxu0 %v687
    %1696 = vmatpush1.msra.mxu0 %v686
    %1697 = vmatprep.subr.mxu0 %v669
    %1698 = vmatpush1.msra.mxu0 %v668
    %1699 = vmatprep.subr.mxu0 %v651
    %1700 = vmatpush1.msra.mxu0 %v650
    %1701 = vmatprep.subr.mxu0 %v633
    %1702 = vmatpush1.msra.mxu0 %v632
    %1703 = vmatprep.subr.mxu0 %v615
    %1704 = vmatpush1.msra.mxu0 %v614
    %1705 = vmatprep.subr.mxu0 0.0
    %1706 = vmatpush2.msra.mxu0 0.0
    %1707 = vmatprep.subr.mxu0 0.0
    %1708 = vmatpush2.msra.mxu0 0.0
    %1709 = vmatprep.subr.mxu0 0.0
    %1710 = vmatpush2.msra.mxu0 0.0
    %1711 = vmatprep.subr.mxu0 0.0
    %1712 = vmatpush2.msra.mxu0 0.0
    %1713 = vmatprep.subr.mxu0 0.0
    %1714 = vmatpush2.msra.mxu0 0.0
    %1715 = vmatprep.subr.mxu0 0.0
    %1716 = vmatpush2.msra.mxu0 0.0
    %1717 = vmatprep.subr.mxu0 0.0
    %1718 = vmatpush2.msra.mxu0 0.0
    %1719 = vmatprep.subr.mxu0 0.0
    %1720 = vmatpush2.msra.mxu0 0.0
    %1721 = vmatprep.subr.mxu0 0.0
    %1722 = vmatpush2.msra.mxu0 0.0
    %1723 = vmatprep.subr.mxu0 0.0
    %1724 = vmatpush2.msra.mxu0 0.0
    %1725 = vmatprep.subr.mxu0 0.0
    %1726 = vmatpush2.msra.mxu0 0.0
    %1727 = vmatprep.subr.mxu0 0.0
    %1728 = vmatpush2.msra.mxu0 0.0
    %1729 = vmatprep.subr.mxu0 0.0
    %1730 = vmatpush2.msra.mxu0 0.0
    %1731 = vmatprep.subr.mxu0 0.0
    %1732 = vmatpush2.msra.mxu0 0.0
    %1733 = vmatprep.subr.mxu0 0.0
    %1734 = vmatpush2.msra.mxu0 0.0
    %1735 = vmatprep.subr.mxu0 0.0
    %1736 = vmatpush2.msra.mxu0 0.0
    %1737 = vmatprep.mubr.f32.mxu0 0.0
    %1738 = vmatmul.mubr.f32.gmra.mxu0 %v27
    %v1739 = vpop.f32.mrf.mxu0
    %v1740 = vadd.f32 %v1669, %v1739
    %v1741 = vpop.f32.mrf.mxu0
    %v1742 = vadd.f32 %v1671, %v1741
    %1743 = vdwg.mxu0
    %1744 = vmatprep.subr.mxu0 %v311
    %1745 = vmatpush1.msra.mxu0 %v310
    %1746 = vmatprep.subr.mxu0 %v293
    %1747 = vmatpush1.msra.mxu0 %v292
    %1748 = vmatprep.subr.mxu0 %v275
    %1749 = vmatpush1.msra.mxu0 %v274
    %1750 = vmatprep.subr.mxu0 %v257
    %1751 = vmatpush1.msra.mxu0 %v256
    %1752 = vmatprep.subr.mxu0 %v239
    %1753 = vmatpush1.msra.mxu0 %v238
    %1754 = vmatprep.subr.mxu0 %v221
    %1755 = vmatpush1.msra.mxu0 %v220
    %1756 = vmatprep.subr.mxu0 %v203
    %1757 = vmatpush1.msra.mxu0 %v202
    %1758 = vmatprep.subr.mxu0 %v185
    %1759 = vmatpush1.msra.mxu0 %v184
    %1760 = vmatprep.subr.mxu0 %v167
    %1761 = vmatpush1.msra.mxu0 %v166
    %1762 = vmatprep.subr.mxu0 %v149
    %1763 = vmatpush1.msra.mxu0 %v148
    %1764 = vmatprep.subr.mxu0 %v131
    %1765 = vmatpush1.msra.mxu0 %v130
    %1766 = vmatprep.subr.mxu0 %v113
    %1767 = vmatpush1.msra.mxu0 %v112
    %1768 = vmatprep.subr.mxu0 %v95
    %1769 = vmatpush1.msra.mxu0 %v94
    %1770 = vmatprep.subr.mxu0 %v77
    %1771 = vmatpush1.msra.mxu0 %v76
    %1772 = vmatprep.subr.mxu0 %v59
    %1773 = vmatpush1.msra.mxu0 %v58
    %1774 = vmatprep.subr.mxu0 %v41
    %1775 = vmatpush1.msra.mxu0 %v40
    %1776 = vmatprep.subr.mxu0 %v599
    %1777 = vmatpush2.msra.mxu0 %v598
    %1778 = vmatprep.subr.mxu0 %v581
    %1779 = vmatpush2.msra.mxu0 %v580
    %1780 = vmatprep.subr.mxu0 %v563
    %1781 = vmatpush2.msra.mxu0 %v562
    %1782 = vmatprep.subr.mxu0 %v545
    %1783 = vmatpush2.msra.mxu0 %v544
    %1784 = vmatprep.subr.mxu0 %v527
    %1785 = vmatpush2.msra.mxu0 %v526
    %1786 = vmatprep.subr.mxu0 %v509
    %1787 = vmatpush2.msra.mxu0 %v508
    %1788 = vmatprep.subr.mxu0 %v491
    %1789 = vmatpush2.msra.mxu0 %v490
    %1790 = vmatprep.subr.mxu0 %v473
    %1791 = vmatpush2.msra.mxu0 %v472
    %1792 = vmatprep.subr.mxu0 %v455
    %1793 = vmatpush2.msra.mxu0 %v454
    %1794 = vmatprep.subr.mxu0 %v437
    %1795 = vmatpush2.msra.mxu0 %v436
    %1796 = vmatprep.subr.mxu0 %v419
    %1797 = vmatpush2.msra.mxu0 %v418
    %1798 = vmatprep.subr.mxu0 %v401
    %1799 = vmatpush2.msra.mxu0 %v400
    %1800 = vmatprep.subr.mxu0 %v383
    %1801 = vmatpush2.msra.mxu0 %v382
    %1802 = vmatprep.subr.mxu0 %v365
    %1803 = vmatpush2.msra.mxu0 %v364
    %1804 = vmatprep.subr.mxu0 %v347
    %1805 = vmatpush2.msra.mxu0 %v346
    %1806 = vmatprep.subr.mxu0 %v329
    %1807 = vmatpush2.msra.mxu0 %v328
    %1808 = vmatprep.mubr.f32.mxu0 %v26
    %1809 = vmatmul.mubr.f32.gmra.mxu0 %v25
    %v1810 = vpop.f32.mrf.mxu0
    %v1811 = vadd.f32 0.0, %v1810
    %v1812 = vpop.f32.mrf.mxu0
    %v1813 = vadd.f32 0.0, %v1812
    %1814 = vdwg.mxu0
    %1815 = vmatprep.subr.mxu0 %v887
    %1816 = vmatpush1.msra.mxu0 %v886
    %1817 = vmatprep.subr.mxu0 %v869
    %1818 = vmatpush1.msra.mxu0 %v868
    %1819 = vmatprep.subr.mxu0 %v851
    %1820 = vmatpush1.msra.mxu0 %v850
    %1821 = vmatprep.subr.mxu0 %v833
    %1822 = vmatpush1.msra.mxu0 %v832
    %1823 = vmatprep.subr.mxu0 %v815
    %1824 = vmatpush1.msra.mxu0 %v814
    %1825 = vmatprep.subr.mxu0 %v797
    %1826 = vmatpush1.msra.mxu0 %v796
    %1827 = vmatprep.subr.mxu0 %v779
    %1828 = vmatpush1.msra.mxu0 %v778
    %1829 = vmatprep.subr.mxu0 %v761
    %1830 = vmatpush1.msra.mxu0 %v760
    %1831 = vmatprep.subr.mxu0 %v743
    %1832 = vmatpush1.msra.mxu0 %v742
    %1833 = vmatprep.subr.mxu0 %v725
    %1834 = vmatpush1.msra.mxu0 %v724
    %1835 = vmatprep.subr.mxu0 %v707
    %1836 = vmatpush1.msra.mxu0 %v706
    %1837 = vmatprep.subr.mxu0 %v689
    %1838 = vmatpush1.msra.mxu0 %v688
    %1839 = vmatprep.subr.mxu0 %v671
    %1840 = vmatpush1.msra.mxu0 %v670
    %1841 = vmatprep.subr.mxu0 %v653
    %1842 = vmatpush1.msra.mxu0 %v652
    %1843 = vmatprep.subr.mxu0 %v635
    %1844 = vmatpush1.msra.mxu0 %v634
    %1845 = vmatprep.subr.mxu0 %v617
    %1846 = vmatpush1.msra.mxu0 %v616
    %1847 = vmatprep.subr.mxu0 0.0
    %1848 = vmatpush2.msra.mxu0 0.0
    %1849 = vmatprep.subr.mxu0 0.0
    %1850 = vmatpush2.msra.mxu0 0.0
    %1851 = vmatprep.subr.mxu0 0.0
    %1852 = vmatpush2.msra.mxu0 0.0
    %1853 = vmatprep.subr.mxu0 0.0
    %1854 = vmatpush2.msra.mxu0 0.0
    %1855 = vmatprep.subr.mxu0 0.0
    %1856 = vmatpush2.msra.mxu0 0.0
    %1857 = vmatprep.subr.mxu0 0.0
    %1858 = vmatpush2.msra.mxu0 0.0
    %1859 = vmatprep.subr.mxu0 0.0
    %1860 = vmatpush2.msra.mxu0 0.0
    %1861 = vmatprep.subr.mxu0 0.0
    %1862 = vmatpush2.msra.mxu0 0.0
    %1863 = vmatprep.subr.mxu0 0.0
    %1864 = vmatpush2.msra.mxu0 0.0
    %1865 = vmatprep.subr.mxu0 0.0
    %1866 = vmatpush2.msra.mxu0 0.0
    %1867 = vmatprep.subr.mxu0 0.0
    %1868 = vmatpush2.msra.mxu0 0.0
    %1869 = vmatprep.subr.mxu0 0.0
    %1870 = vmatpush2.msra.mxu0 0.0
    %1871 = vmatprep.subr.mxu0 0.0
    %1872 = vmatpush2.msra.mxu0 0.0
    %1873 = vmatprep.subr.mxu0 0.0
    %1874 = vmatpush2.msra.mxu0 0.0
    %1875 = vmatprep.subr.mxu0 0.0
    %1876 = vmatpush2.msra.mxu0 0.0
    %1877 = vmatprep.subr.mxu0 0.0
    %1878 = vmatpush2.msra.mxu0 0.0
    %1879 = vmatprep.mubr.f32.mxu0 0.0
    %1880 = vmatmul.mubr.f32.gmra.mxu0 %v27
    %v1881 = vpop.f32.mrf.mxu0
    %v1882 = vadd.f32 %v1811, %v1881
    %v1883 = vpop.f32.mrf.mxu0
    %v1884 = vadd.f32 %v1813, %v1883
    %1885 = vdwg.mxu0
    %1886 = vmatprep.subr.mxu0 %v313
    %1887 = vmatpush1.msra.mxu0 %v312
    %1888 = vmatprep.subr.mxu0 %v295
    %1889 = vmatpush1.msra.mxu0 %v294
    %1890 = vmatprep.subr.mxu0 %v277
    %1891 = vmatpush1.msra.mxu0 %v276
    %1892 = vmatprep.subr.mxu0 %v259
    %1893 = vmatpush1.msra.mxu0 %v258
    %1894 = vmatprep.subr.mxu0 %v241
    %1895 = vmatpush1.msra.mxu0 %v240
    %1896 = vmatprep.subr.mxu0 %v223
    %1897 = vmatpush1.msra.mxu0 %v222
    %1898 = vmatprep.subr.mxu0 %v205
    %1899 = vmatpush1.msra.mxu0 %v204
    %1900 = vmatprep.subr.mxu0 %v187
    %1901 = vmatpush1.msra.mxu0 %v186
    %1902 = vmatprep.subr.mxu0 %v169
    %1903 = vmatpush1.msra.mxu0 %v168
    %1904 = vmatprep.subr.mxu0 %v151
    %1905 = vmatpush1.msra.mxu0 %v150
    %1906 = vmatprep.subr.mxu0 %v133
    %1907 = vmatpush1.msra.mxu0 %v132
    %1908 = vmatprep.subr.mxu0 %v115
    %1909 = vmatpush1.msra.mxu0 %v114
    %1910 = vmatprep.subr.mxu0 %v97
    %1911 = vmatpush1.msra.mxu0 %v96
    %1912 = vmatprep.subr.mxu0 %v79
    %1913 = vmatpush1.msra.mxu0 %v78
    %1914 = vmatprep.subr.mxu0 %v61
    %1915 = vmatpush1.msra.mxu0 %v60
    %1916 = vmatprep.subr.mxu0 %v43
    %1917 = vmatpush1.msra.mxu0 %v42
    %1918 = vmatprep.subr.mxu0 %v601
    %1919 = vmatpush2.msra.mxu0 %v600
    %1920 = vmatprep.subr.mxu0 %v583
    %1921 = vmatpush2.msra.mxu0 %v582
    %1922 = vmatprep.subr.mxu0 %v565
    %1923 = vmatpush2.msra.mxu0 %v564
    %1924 = vmatprep.subr.mxu0 %v547
    %1925 = vmatpush2.msra.mxu0 %v546
    %1926 = vmatprep.subr.mxu0 %v529
    %1927 = vmatpush2.msra.mxu0 %v528
    %1928 = vmatprep.subr.mxu0 %v511
    %1929 = vmatpush2.msra.mxu0 %v510
    %1930 = vmatprep.subr.mxu0 %v493
    %1931 = vmatpush2.msra.mxu0 %v492
    %1932 = vmatprep.subr.mxu0 %v475
    %1933 = vmatpush2.msra.mxu0 %v474
    %1934 = vmatprep.subr.mxu0 %v457
    %1935 = vmatpush2.msra.mxu0 %v456
    %1936 = vmatprep.subr.mxu0 %v439
    %1937 = vmatpush2.msra.mxu0 %v438
    %1938 = vmatprep.subr.mxu0 %v421
    %1939 = vmatpush2.msra.mxu0 %v420
    %1940 = vmatprep.subr.mxu0 %v403
    %1941 = vmatpush2.msra.mxu0 %v402
    %1942 = vmatprep.subr.mxu0 %v385
    %1943 = vmatpush2.msra.mxu0 %v384
    %1944 = vmatprep.subr.mxu0 %v367
    %1945 = vmatpush2.msra.mxu0 %v366
    %1946 = vmatprep.subr.mxu0 %v349
    %1947 = vmatpush2.msra.mxu0 %v348
    %1948 = vmatprep.subr.mxu0 %v331
    %1949 = vmatpush2.msra.mxu0 %v330
    %1950 = vmatprep.mubr.f32.mxu0 %v26
    %1951 = vmatmul.mubr.f32.gmra.mxu0 %v25
    %v1952 = vpop.f32.mrf.mxu0
    %v1953 = vadd.f32 0.0, %v1952
    %v1954 = vpop.f32.mrf.mxu0
    %v1955 = vadd.f32 0.0, %v1954
    %1956 = vdwg.mxu0
    %1957 = vmatprep.subr.mxu0 %v889
    %1958 = vmatpush1.msra.mxu0 %v888
    %1959 = vmatprep.subr.mxu0 %v871
    %1960 = vmatpush1.msra.mxu0 %v870
    %1961 = vmatprep.subr.mxu0 %v853
    %1962 = vmatpush1.msra.mxu0 %v852
    %1963 = vmatprep.subr.mxu0 %v835
    %1964 = vmatpush1.msra.mxu0 %v834
    %1965 = vmatprep.subr.mxu0 %v817
    %1966 = vmatpush1.msra.mxu0 %v816
    %1967 = vmatprep.subr.mxu0 %v799
    %1968 = vmatpush1.msra.mxu0 %v798
    %1969 = vmatprep.subr.mxu0 %v781
    %1970 = vmatpush1.msra.mxu0 %v780
    %1971 = vmatprep.subr.mxu0 %v763
    %1972 = vmatpush1.msra.mxu0 %v762
    %1973 = vmatprep.subr.mxu0 %v745
    %1974 = vmatpush1.msra.mxu0 %v744
    %1975 = vmatprep.subr.mxu0 %v727
    %1976 = vmatpush1.msra.mxu0 %v726
    %1977 = vmatprep.subr.mxu0 %v709
    %1978 = vmatpush1.msra.mxu0 %v708
    %1979 = vmatprep.subr.mxu0 %v691
    %1980 = vmatpush1.msra.mxu0 %v690
    %1981 = vmatprep.subr.mxu0 %v673
    %1982 = vmatpush1.msra.mxu0 %v672
    %1983 = vmatprep.subr.mxu0 %v655
    %1984 = vmatpush1.msra.mxu0 %v654
    %1985 = vmatprep.subr.mxu0 %v637
    %1986 = vmatpush1.msra.mxu0 %v636
    %1987 = vmatprep.subr.mxu0 %v619
    %1988 = vmatpush1.msra.mxu0 %v618
    %1989 = vmatprep.subr.mxu0 0.0
    %1990 = vmatpush2.msra.mxu0 0.0
    %1991 = vmatprep.subr.mxu0 0.0
    %1992 = vmatpush2.msra.mxu0 0.0
    %1993 = vmatprep.subr.mxu0 0.0
    %1994 = vmatpush2.msra.mxu0 0.0
    %1995 = vmatprep.subr.mxu0 0.0
    %1996 = vmatpush2.msra.mxu0 0.0
    %1997 = vmatprep.subr.mxu0 0.0
    %1998 = vmatpush2.msra.mxu0 0.0
    %1999 = vmatprep.subr.mxu0 0.0
    %2000 = vmatpush2.msra.mxu0 0.0
    %2001 = vmatprep.subr.mxu0 0.0
    %2002 = vmatpush2.msra.mxu0 0.0
    %2003 = vmatprep.subr.mxu0 0.0
    %2004 = vmatpush2.msra.mxu0 0.0
    %2005 = vmatprep.subr.mxu0 0.0
    %2006 = vmatpush2.msra.mxu0 0.0
    %2007 = vmatprep.subr.mxu0 0.0
    %2008 = vmatpush2.msra.mxu0 0.0
    %2009 = vmatprep.subr.mxu0 0.0
    %2010 = vmatpush2.msra.mxu0 0.0
    %2011 = vmatprep.subr.mxu0 0.0
    %2012 = vmatpush2.msra.mxu0 0.0
    %2013 = vmatprep.subr.mxu0 0.0
    %2014 = vmatpush2.msra.mxu0 0.0
    %2015 = vmatprep.subr.mxu0 0.0
    %2016 = vmatpush2.msra.mxu0 0.0
    %2017 = vmatprep.subr.mxu0 0.0
    %2018 = vmatpush2.msra.mxu0 0.0
    %2019 = vmatprep.subr.mxu0 0.0
    %2020 = vmatpush2.msra.mxu0 0.0
    %2021 = vmatprep.mubr.f32.mxu0 0.0
    %2022 = vmatmul.mubr.f32.gmra.mxu0 %v27
    %v2023 = vpop.f32.mrf.mxu0
    %v2024 = vadd.f32 %v1953, %v2023
    %v2025 = vpop.f32.mrf.mxu0
    %v2026 = vadd.f32 %v1955, %v2025
    %2027 = vdwg.mxu0
    %2028 = vmatprep.subr.mxu0 %v315
    %2029 = vmatpush1.msra.mxu0 %v314
    %2030 = vmatprep.subr.mxu0 %v297
    %2031 = vmatpush1.msra.mxu0 %v296
    %2032 = vmatprep.subr.mxu0 %v279
    %2033 = vmatpush1.msra.mxu0 %v278
    %2034 = vmatprep.subr.mxu0 %v261
    %2035 = vmatpush1.msra.mxu0 %v260
    %2036 = vmatprep.subr.mxu0 %v243
    %2037 = vmatpush1.msra.mxu0 %v242
    %2038 = vmatprep.subr.mxu0 %v225
    %2039 = vmatpush1.msra.mxu0 %v224
    %2040 = vmatprep.subr.mxu0 %v207
    %2041 = vmatpush1.msra.mxu0 %v206
    %2042 = vmatprep.subr.mxu0 %v189
    %2043 = vmatpush1.msra.mxu0 %v188
    %2044 = vmatprep.subr.mxu0 %v171
    %2045 = vmatpush1.msra.mxu0 %v170
    %2046 = vmatprep.subr.mxu0 %v153
    %2047 = vmatpush1.msra.mxu0 %v152
    %2048 = vmatprep.subr.mxu0 %v135
    %2049 = vmatpush1.msra.mxu0 %v134
    %2050 = vmatprep.subr.mxu0 %v117
    %2051 = vmatpush1.msra.mxu0 %v116
    %2052 = vmatprep.subr.mxu0 %v99
    %2053 = vmatpush1.msra.mxu0 %v98
    %2054 = vmatprep.subr.mxu0 %v81
    %2055 = vmatpush1.msra.mxu0 %v80
    %2056 = vmatprep.subr.mxu0 %v63
    %2057 = vmatpush1.msra.mxu0 %v62
    %2058 = vmatprep.subr.mxu0 %v45
    %2059 = vmatpush1.msra.mxu0 %v44
    %2060 = vmatprep.subr.mxu0 %v603
    %2061 = vmatpush2.msra.mxu0 %v602
    %2062 = vmatprep.subr.mxu0 %v585
    %2063 = vmatpush2.msra.mxu0 %v584
    %2064 = vmatprep.subr.mxu0 %v567
    %2065 = vmatpush2.msra.mxu0 %v566
    %2066 = vmatprep.subr.mxu0 %v549
    %2067 = vmatpush2.msra.mxu0 %v548
    %2068 = vmatprep.subr.mxu0 %v531
    %2069 = vmatpush2.msra.mxu0 %v530
    %2070 = vmatprep.subr.mxu0 %v513
    %2071 = vmatpush2.msra.mxu0 %v512
    %2072 = vmatprep.subr.mxu0 %v495
    %2073 = vmatpush2.msra.mxu0 %v494
    %2074 = vmatprep.subr.mxu0 %v477
    %2075 = vmatpush2.msra.mxu0 %v476
    %2076 = vmatprep.subr.mxu0 %v459
    %2077 = vmatpush2.msra.mxu0 %v458
    %2078 = vmatprep.subr.mxu0 %v441
    %2079 = vmatpush2.msra.mxu0 %v440
    %2080 = vmatprep.subr.mxu0 %v423
    %2081 = vmatpush2.msra.mxu0 %v422
    %2082 = vmatprep.subr.mxu0 %v405
    %2083 = vmatpush2.msra.mxu0 %v404
    %2084 = vmatprep.subr.mxu0 %v387
    %2085 = vmatpush2.msra.mxu0 %v386
    %2086 = vmatprep.subr.mxu0 %v369
    %2087 = vmatpush2.msra.mxu0 %v368
    %2088 = vmatprep.subr.mxu0 %v351
    %2089 = vmatpush2.msra.mxu0 %v350
    %2090 = vmatprep.subr.mxu0 %v333
    %2091 = vmatpush2.msra.mxu0 %v332
    %2092 = vmatprep.mubr.f32.mxu0 %v26
    %2093 = vmatmul.mubr.f32.gmra.mxu0 %v25
    %v2094 = vpop.f32.mrf.mxu0
    %v2095 = vadd.f32 0.0, %v2094
    %v2096 = vpop.f32.mrf.mxu0
    %v2097 = vadd.f32 0.0, %v2096
    %2098 = vdwg.mxu0
    %2099 = vmatprep.subr.mxu0 %v891
    %2100 = vmatpush1.msra.mxu0 %v890
    %2101 = vmatprep.subr.mxu0 %v873
    %2102 = vmatpush1.msra.mxu0 %v872
    %2103 = vmatprep.subr.mxu0 %v855
    %2104 = vmatpush1.msra.mxu0 %v854
    %2105 = vmatprep.subr.mxu0 %v837
    %2106 = vmatpush1.msra.mxu0 %v836
    %2107 = vmatprep.subr.mxu0 %v819
    %2108 = vmatpush1.msra.mxu0 %v818
    %2109 = vmatprep.subr.mxu0 %v801
    %2110 = vmatpush1.msra.mxu0 %v800
    %2111 = vmatprep.subr.mxu0 %v783
    %2112 = vmatpush1.msra.mxu0 %v782
    %2113 = vmatprep.subr.mxu0 %v765
    %2114 = vmatpush1.msra.mxu0 %v764
    %2115 = vmatprep.subr.mxu0 %v747
    %2116 = vmatpush1.msra.mxu0 %v746
    %2117 = vmatprep.subr.mxu0 %v729
    %2118 = vmatpush1.msra.mxu0 %v728
    %2119 = vmatprep.subr.mxu0 %v711
    %2120 = vmatpush1.msra.mxu0 %v710
    %2121 = vmatprep.subr.mxu0 %v693
    %2122 = vmatpush1.msra.mxu0 %v692
    %2123 = vmatprep.subr.mxu0 %v675
    %2124 = vmatpush1.msra.mxu0 %v674
    %2125 = vmatprep.subr.mxu0 %v657
    %2126 = vmatpush1.msra.mxu0 %v656
    %2127 = vmatprep.subr.mxu0 %v639
    %2128 = vmatpush1.msra.mxu0 %v638
    %2129 = vmatprep.subr.mxu0 %v621
    %2130 = vmatpush1.msra.mxu0 %v620
    %2131 = vmatprep.subr.mxu0 0.0
    %2132 = vmatpush2.msra.mxu0 0.0
    %2133 = vmatprep.subr.mxu0 0.0
    %2134 = vmatpush2.msra.mxu0 0.0
    %2135 = vmatprep.subr.mxu0 0.0
    %2136 = vmatpush2.msra.mxu0 0.0
    %2137 = vmatprep.subr.mxu0 0.0
    %2138 = vmatpush2.msra.mxu0 0.0
    %2139 = vmatprep.subr.mxu0 0.0
    %2140 = vmatpush2.msra.mxu0 0.0
    %2141 = vmatprep.subr.mxu0 0.0
    %2142 = vmatpush2.msra.mxu0 0.0
    %2143 = vmatprep.subr.mxu0 0.0
    %2144 = vmatpush2.msra.mxu0 0.0
    %2145 = vmatprep.subr.mxu0 0.0
    %2146 = vmatpush2.msra.mxu0 0.0
    %2147 = vmatprep.subr.mxu0 0.0
    %2148 = vmatpush2.msra.mxu0 0.0
    %2149 = vmatprep.subr.mxu0 0.0
    %2150 = vmatpush2.msra.mxu0 0.0
    %2151 = vmatprep.subr.mxu0 0.0
    %2152 = vmatpush2.msra.mxu0 0.0
    %2153 = vmatprep.subr.mxu0 0.0
    %2154 = vmatpush2.msra.mxu0 0.0
    %2155 = vmatprep.subr.mxu0 0.0
    %2156 = vmatpush2.msra.mxu0 0.0
    %2157 = vmatprep.subr.mxu0 0.0
    %2158 = vmatpush2.msra.mxu0 0.0
    %2159 = vmatprep.subr.mxu0 0.0
    %2160 = vmatpush2.msra.mxu0 0.0
    %2161 = vmatprep.subr.mxu0 0.0
    %2162 = vmatpush2.msra.mxu0 0.0
    %2163 = vmatprep.mubr.f32.mxu0 0.0
    %2164 = vmatmul.mubr.f32.gmra.mxu0 %v27
    %v2165 = vpop.f32.mrf.mxu0
    %v2166 = vadd.f32 %v2095, %v2165
    %v2167 = vpop.f32.mrf.mxu0
    %v2168 = vadd.f32 %v2097, %v2167
    %2169 = vdwg.mxu0
    %v2170 = vmul.f32 %v1030, %v1030
    %v2171 = vmul.f32 %v1032, %v1032
    %v2172 = vmul.f32 %v1172, %v1172
    %v2173 = vmul.f32 %v1174, %v1174
    %v2174 = vmul.f32 %v1314, %v1314
    %v2175 = vmul.f32 %v1316, %v1316
    %v2176 = vadd.f32 %v2170, %v2173
    %v2177 = vadd.f32 %v2171, %v2174
    %v2178 = vadd.f32 %v2172, %v2175
    %v2179 = vadd.f32 %v2176, %v2177
    %v2180 = vadd.f32 %v2179, %v2178
    %2181 = vadd.xlane.f32.xlu0 %v2180
    %v2182 = vpop.xlane.xlu0 %2181
    %vm2183 = vcmp.gt.f32.partialorder %v2182, 0.0
    %v2184 = vsel %vm2183, %v2182, 1.0
    %v2185 = vrcp.pop %v2184
    %v2186 = vmul.f32 %v2176, %v2185
    %v2187 = vmul.f32 %v2177, %v2185
    %v2188 = vmul.f32 %v2178, %v2185
    %v2189 = vmul.f32 %v1456, %v1456
    %v2190 = vmul.f32 %v1458, %v1458
    %v2191 = vmul.f32 %v1598, %v1598
    %v2192 = vmul.f32 %v1600, %v1600
    %v2193 = vmul.f32 %v1740, %v1740
    %v2194 = vmul.f32 %v1742, %v1742
    %v2195 = vadd.f32 %v2189, %v2192
    %v2196 = vadd.f32 %v2190, %v2193
    %v2197 = vadd.f32 %v2191, %v2194
    %v2198 = vadd.f32 %v2195, %v2196
    %v2199 = vadd.f32 %v2198, %v2197
    %2200 = vadd.xlane.f32.xlu0 %v2199
    %v2201 = vpop.xlane.xlu0 %2200
    %vm2202 = vcmp.gt.f32.partialorder %v2201, 0.0
    %v2203 = vsel %vm2202, %v2201, 1.0
    %v2204 = vrcp.pop %v2203
    %v2205 = vmul.f32 %v2195, %v2204
    %v2206 = vmul.f32 %v2196, %v2204
    %v2207 = vmul.f32 %v2197, %v2204
    %v2208 = vmul.f32 %v1882, %v1882
    %v2209 = vmul.f32 %v1884, %v1884
    %v2210 = vmul.f32 %v2024, %v2024
    %v2211 = vmul.f32 %v2026, %v2026
    %v2212 = vmul.f32 %v2166, %v2166
    %v2213 = vmul.f32 %v2168, %v2168
    %v2214 = vadd.f32 %v2208, %v2211
    %v2215 = vadd.f32 %v2209, %v2212
    %v2216 = vadd.f32 %v2210, %v2213
    %v2217 = vadd.f32 %v2214, %v2215
    %v2218 = vadd.f32 %v2217, %v2216
    %2219 = vadd.xlane.f32.xlu0 %v2218
    %v2220 = vpop.xlane.xlu0 %2219
    %vm2221 = vcmp.gt.f32.partialorder %v2220, 0.0
    %v2222 = vsel %vm2221, %v2220, 1.0
    %v2223 = vrcp.pop %v2222
    %v2224 = vmul.f32 %v2214, %v2223
    %v2225 = vmul.f32 %v2215, %v2223
    %v2226 = vmul.f32 %v2216, %v2223
    %v2227 = vsub.f32 %v2186, %v2205
    %v2228 = vsub.f32 %v2187, %v2206
    %v2229 = vsub.f32 %v2188, %v2207
    %v2230 = vsub.f32 %v2205, %v2224
    %v2231 = vsub.f32 %v2206, %v2225
    %v2232 = vsub.f32 %v2207, %v2226
    %v2233 = vmul.f32 %v2227, %v2227
    %v2234 = vmul.f32 %v2228, %v2228
    %v2235 = vmul.f32 %v2229, %v2229
    %v2236 = vadd.f32 %v2233, %v2234
    %v2237 = vadd.f32 %v2236, %v2235
    %2238 = vadd.xlane.f32.xlu0 %v2237
    %v2239 = vpop.xlane.xlu0 %2238
    %v2240 = vrot.slane %v2239, 4
    %v2241 = vadd.f32 %v2239, %v2240
    %v2242 = vrot.slane %v2241, 2
    %v2243 = vadd.f32 %v2241, %v2242
    %v2244 = vrot.slane %v2243, 1
    %v2245 = vadd.f32 %v2243, %v2244
    %s2246 = vtos %v2245
    %v2247 = vmul.f32 %v2230, %v2230
    %v2248 = vmul.f32 %v2231, %v2231
    %v2249 = vmul.f32 %v2232, %v2232
    %v2250 = vadd.f32 %v2247, %v2248
    %v2251 = vadd.f32 %v2250, %v2249
    %2252 = vadd.xlane.f32.xlu0 %v2251
    %v2253 = vpop.xlane.xlu0 %2252
    %v2254 = vrot.slane %v2253, 4
    %v2255 = vadd.f32 %v2253, %v2254
    %v2256 = vrot.slane %v2255, 2
    %v2257 = vadd.f32 %v2255, %v2256
    %v2258 = vrot.slane %v2257, 1
    %v2259 = vadd.f32 %v2257, %v2258
    %s2260 = vtos %v2259
    %s2261 = sadd.f32 %s2246, %s2260
    %s2262 = smul.f32 %s2261, 0.0019455253
    %s2263 = smul.f32 %s2262, 0.0009765625
    %v2264 = vstv %s2263
    %2265 = vst [vmem:[%s2] sm:$0xff] %v2264
    // Predicated region
    $region14: #{_loss_jit.1} parent=1 // pred_check
      _
    $region15: #{_loss_jit.1} parent=1 // pred_check_branch
      %2267 = sbr.rel (0) target = $region17
    $region16: #{_loss_jit.1} parent=1 // pred_region
      _
    $region17: #{_loss_jit.1} parent=1 // pred_fallthru
      _
    // Predicated region
    $region18: #{_loss_jit.1} parent=1 // pred_check
      _
    $region19: #{_loss_jit.1} parent=1 // pred_check_branch
      %2269 = sbr.rel (0) target = $region21
    $region20: #{_loss_jit.1} parent=1 // pred_region
      _
    $region21: #{_loss_jit.1} parent=1 // pred_fallthru
      _
    %2270 = vsyncpa [#allocation3], 1

</llo_original>
